<compile_context>
chip_gen: v6e
topology: v6e:2x2x1
jax: 0.10.0
libtpu: 0.0.40
codegen_flags: <defaults>
</compile_context>

<pallas_src>
import functools

import jax
import jax.numpy as jnp
from jax import lax
from jax.experimental import pallas as pl
from jax.experimental.pallas import tpu as pltpu

# ~75% of v7x's 64 MiB physical VMEM (leave headroom for compiler scratch and
# pipelining buffers); comfortably under v5e/v6e's 128 MiB.
_VMEM_LIMIT = 48 * 1024 * 1024


def _pick_tile(size, cap, multiple):
    """Largest divisor of `size` that is <= cap and (== size or % multiple == 0)."""
    cap = max(1, min(size, cap))
    if size <= cap:
        return size
    for t in range(cap, 0, -1):
        if size % t == 0 and t % multiple == 0:
            return t
    return size  # fall back: single tile (always layout-legal)


# ------------------- Kernel A: fused kNN + local covariance -------------------

def _knn_cov_kernel(q_ref, p_ref, idx_ref, cov_ref, *, k):
    """Per (batch, S-tile): VPU pairwise sq-distances, iterative k-smallest
    selection via a single argmin per neighbour (first-min tie-break), and the
    3x3 neighbourhood covariance via a one-hot-mask moment matmul (no gather)."""
    q = q_ref[0]                                    # (S_t, 3) query centers
    p = p_ref[0]                                    # (3, N)   all points, lane-dense N
    s_t = q.shape[0]
    n = p.shape[1]

    # Squared distances on the VPU: a contraction depth of 3 would waste the MXU.
    d = jnp.zeros((s_t, n), jnp.float32)
    for c in range(3):
        diff = q[:, c:c + 1] - p[c:c + 1, :]        # (S_t, N) broadcast
        d = d + diff * diff

    iota_i = lax.broadcasted_iota(jnp.int32, (s_t, n), 1)
    big = jnp.float32(1e30)

    # k-smallest: one combined argmin per neighbour (single variadic XLU reduce,
    # lowest-index tie-break) instead of min + masked second min; each index
    # column is stored straight into idx_ref (no list + concat).
    mask = jnp.zeros((s_t, n), jnp.float32)         # sum of one-hot selections
    cur = d
    for i in range(k):
        mi = jnp.argmin(cur, axis=-1, keepdims=True).astype(jnp.int32)  # (S_t, 1)
        idx_ref[0, :, i:i + 1] = mi
        hit = iota_i == mi
        mask = mask + hit.astype(jnp.float32)
        cur = jnp.where(hit, big, cur)

    # cov_ij = E[x_i x_j] - E[x_i] E[x_j], E = (1/k) sum over the k neighbours.
    # TODO(synk): mom is recomputed each S-tile; hoist to a per-batch scratch
    # (pl.when on first s step + 'arbitrary' s axis) if N becomes large.
    # TODO(synk): population (1/k) normalization; switch to 1/(k-1) if the
    # reference cov() uses the unbiased estimator.
    x = p[0:1, :]
    y = p[1:2, :]
    z = p[2:3, :]
    mom = jnp.concatenate([x, y, z, x * x, x * y, x * z, y * y, y * z, z * z],
                          axis=0)                                     # (9, N)
    sums = lax.dot_general(mask, mom, (((1,), (1,)), ((), ())),
                           preferred_element_type=jnp.float32)        # (S_t, 9)
    sums = sums * jnp.float32(1.0 / k)
    mx, my, mz = sums[:, 0:1], sums[:, 1:2], sums[:, 2:3]
    sxx, sxy, sxz = sums[:, 3:4], sums[:, 4:5], sums[:, 5:6]
    syy, syz, szz = sums[:, 6:7], sums[:, 7:8], sums[:, 8:9]
    c00 = sxx - mx * mx
    c01 = sxy - mx * my
    c02 = sxz - mx * mz
    c11 = syy - my * my
    c12 = syz - my * mz
    c22 = szz - mz * mz
    cov_ref[0] = jnp.concatenate(
        [c00, c01, c02, c01, c11, c12, c02, c12, c22], axis=-1)       # (S_t, 9)


def knn_cov(xyz_new, xyz_t, *, k, s_tile):
    """xyz_new: (B,S,3) centers; xyz_t: (B,3,N) all points (lane-dense N)."""
    B, S, _ = xyz_new.shape
    _, _, N = xyz_t.shape
    kern = functools.partial(_knn_cov_kernel, k=k)
    return pl.pallas_call(
        kern,
        out_shape=(jax.ShapeDtypeStruct((B, S, k), jnp.int32),
                   jax.ShapeDtypeStruct((B, S, 9), jnp.float32)),
        grid=(B, S // s_tile),
        in_specs=[
            pl.BlockSpec((1, s_tile, 3), lambda b, s: (b, s, 0)),
            # Points are constant across the s axis -> single-buffer the block.
            pl.BlockSpec((1, 3, N), lambda b, s: (b, 0, 0),
                         pipeline_mode=pl.Buffered(1)),
        ],
        out_specs=[pl.BlockSpec((1, s_tile, k), lambda b, s: (b, s, 0)),
                   pl.BlockSpec((1, s_tile, 9), lambda b, s: (b, s, 0))],
        compiler_params=pltpu.CompilerParams(
            dimension_semantics=("parallel", "parallel"),
            vmem_limit_bytes=_VMEM_LIMIT),
    )(xyz_new, xyz_t)


# --------- Kernel B: fused gather + max-pool + mlp_cov + mlp_f (no concat) ----

def _group_mlp_kernel(idx_ref,                       # SMEM (B*S*k,) int32 (prefetch)
                      f_ref,                         # VMEM (N, C)  batch squeezed
                      cov_ref,                       # VMEM (1, S_t, 9)
                      wcov_ref, bcov_ref,            # (9,Ccov), (1,Ccov)
                      wf1a_ref, wf1b_ref, bf1_ref,   # (C,H), (Ccov,H), (1,H)
                      wf2_ref, bf2_ref,              # (Cout,H), (Cout,1)
                      out_ref,                       # VMEM (1, C_out, S_t)
                      fmax_ref,                      # scratch VMEM (S_t, C)
                      *, k, s_tile, S, group):
    b = pl.program_id(0)
    st = pl.program_id(1)
    row0 = b * S + st * s_tile                       # first center in flat idx

    # Neighborhood max-pool: gather k feature rows per center from the
    # VMEM-resident (N, C) block — grouped_f (B,C,S,k) never touches HBM.
    # `group` centers per iteration: full (group, C) sublane-aligned stores and
    # several centers' scalar SMEM reads / dynamic row loads in flight together.
    def gather_group(g, carry):
        base = (row0 + g * group) * k
        rows = []
        for j in range(group):
            off = base + j * k
            acc = f_ref[pl.ds(idx_ref[off], 1), :]                    # (1, C)
            for kk in range(1, k):
                acc = jnp.maximum(acc, f_ref[pl.ds(idx_ref[off + kk], 1), :])
            rows.append(acc)
        dst = pl.multiple_of(g * group, group)
        fmax_ref[pl.ds(dst, group), :] = jnp.concatenate(rows, axis=0)
        return carry

    lax.fori_loop(0, s_tile // group, gather_group, 0)

    # mlp_cov: weights pre-transposed host-side to (in, out) -> canonical
    # (M,K)@(K,N) MXU orientation.
    f_cov = jnp.maximum(
        jnp.dot(cov_ref[0], wcov_ref[...], preferred_element_type=jnp.float32)
        + bcov_ref[...], 0.0)                                         # (S_t, C_cov)

    # mlp_f layer 1 on cat([f_max, f_cov], dim=1) without the concat: W1=[W1a|W1b].
    h = jnp.dot(fmax_ref[...], wf1a_ref[...], preferred_element_type=jnp.float32)
    h = h + jnp.dot(f_cov, wf1b_ref[...], preferred_element_type=jnp.float32)
    h = jnp.maximum(h + bf1_ref[...], 0.0)                            # (S_t, H)

    # Final layer computed channel-major: out^T = W2 @ h^T, so the kernel writes
    # the (C_out, S_t) output block directly and the trailing XLA
    # (B,S,Cout)->(B,Cout,S) transpose (a full HBM round trip) disappears.
    y_t = lax.dot_general(wf2_ref[...], h, (((1,), (1,)), ((), ())),
                          preferred_element_type=jnp.float32)         # (C_out, S_t)
    out_ref[0] = jnp.maximum(y_t + bf2_ref[...], 0.0)


def group_mlp(idx, f_nc, cov, params, *, k, s_tile):
    """idx: (B,S,k) int32; f_nc: (B,N,C) point-major features; cov: (B,S,9).
    Returns channel-major (B, C_out, S)."""
    B, N, C = f_nc.shape
    S = cov.shape[1]
    c_cov = params["w_cov"].shape[0]
    hidden = params["w_f1"].shape[0]
    c_out = params["w_f2"].shape[0]

    # One-time host weight prep: (out,in) -> (in,out).  W_f2 stays (out,in)
    # because it is the LHS of the channel-major final matmul.
    w_cov_t = jnp.transpose(params["w_cov"])            # (9, c_cov)
    w_f1a_t = jnp.transpose(params["w_f1"][:, :C])      # (C, hidden)   -> f_max part
    w_f1b_t = jnp.transpose(params["w_f1"][:, C:])      # (c_cov, hidden) -> f_cov part
    w_f2 = params["w_f2"]                                # (c_out, hidden)

    # 1-D scalar-prefetch index array: avoids the 8-row SMEM sublane padding of
    # a 2-D [B, S*k] layout.
    idx_flat = idx.reshape(B * S * k)

    group = 8
    while s_tile % group != 0:
        group //= 2

    kern = functools.partial(_group_mlp_kernel, k=k, s_tile=s_tile, S=S,
                             group=group)
    wmap = lambda b, s, idxp: (0, 0)
    single = pl.Buffered(1)      # constant-across-s blocks: no double buffering
    grid_spec = pltpu.PrefetchScalarGridSpec(
        num_scalar_prefetch=1,
        grid=(B, S // s_tile),
        in_specs=[
            pl.BlockSpec((None, N, C), lambda b, s, idxp: (b, 0, 0),
                         pipeline_mode=single),                          # features
            pl.BlockSpec((1, s_tile, 9), lambda b, s, idxp: (b, s, 0)),  # cov
            pl.BlockSpec((9, c_cov), wmap, pipeline_mode=single),
            pl.BlockSpec((1, c_cov), wmap, pipeline_mode=single),
            pl.BlockSpec((C, hidden), wmap, pipeline_mode=single),
            pl.BlockSpec((c_cov, hidden), wmap, pipeline_mode=single),
            pl.BlockSpec((1, hidden), wmap, pipeline_mode=single),
            pl.BlockSpec((c_out, hidden), wmap, pipeline_mode=single),
            pl.BlockSpec((c_out, 1), wmap, pipeline_mode=single),
        ],
        out_specs=pl.BlockSpec((1, c_out, s_tile), lambda b, s, idxp: (b, 0, s)),
        scratch_shapes=[pltpu.VMEM((s_tile, C), jnp.float32)],
    )
    return pl.pallas_call(
        kern,
        out_shape=jax.ShapeDtypeStruct((B, c_out, S), jnp.float32),
        grid_spec=grid_spec,
        compiler_params=pltpu.CompilerParams(
            dimension_semantics=("parallel", "parallel"),
            vmem_limit_bytes=_VMEM_LIMIT),
    )(idx_flat, f_nc, cov,
      w_cov_t, params["b_cov"].reshape(1, c_cov),
      w_f1a_t, w_f1b_t, params["b_f1"].reshape(1, hidden),
      w_f2, params["b_f2"].reshape(c_out, 1))


# ------------------------------- JAX glue -------------------------------------

def _fps_single(xyz, npoints):
    """Farthest point sampling on (N,3); deterministic start at index 0."""
    # TODO(synk): reference CUDA fps may pick a random starting point; we fix index 0.
    N = xyz.shape[0]

    def body(i, state):
        idxs, dists, last = state
        d = jnp.sum((xyz - xyz[last]) ** 2, axis=-1)
        dists = jnp.minimum(dists, d)
        nxt = jnp.argmax(dists).astype(jnp.int32)
        idxs = idxs.at[i].set(nxt)
        return idxs, dists, nxt

    idxs0 = jnp.zeros((npoints,), jnp.int32)
    dists0 = jnp.full((N,), jnp.inf, dtype=jnp.float32)
    idxs, _, _ = lax.fori_loop(1, npoints, body, (idxs0, dists0, jnp.int32(0)))
    return xyz[idxs]                                   # (npoints, 3)


def lfe_forward(f, xyz, params, npoints, k):
    """LFE.forward: (f:(B,C,N), xyz:(B,N,3)) -> (f_out:(B,Cout,S), xyz_new:(B,S,3))."""
    B, C, N = f.shape
    S = npoints

    # Kernel A tile: ~8 live (s_tile, N) f32 temporaries must stay well under
    # VMEM (v7x guard) -> shrink s_tile when N is large.
    budget = 12 * 1024 * 1024
    cap_a = min(128, max(8, budget // max(1, 8 * 4 * N)))
    s_tile_a = _pick_tile(S, cap_a, 8)
    # Kernel B tile: M of its matmuls; 256 fills the 256-wide MXU on v6e/v7x and
    # halves per-grid-step overhead (v5e just runs two MXU passes). Must be a
    # multiple of 128 (it is the lane dim of the channel-major output) or == S.
    s_tile_b = _pick_tile(S, 256, 128)

    # fps(xyz, npoints, BNC=True)
    xyz_new = jax.vmap(lambda p: _fps_single(p, npoints))(xyz)       # (B, S, 3)

    # knn_point + cov fused: distances / k-select / 3x3 covariance stay in VMEM.
    xyz_t = jnp.transpose(xyz, (0, 2, 1))                            # (B, 3, N)
    idx, cov9 = knn_cov(xyz_new, xyz_t, k=k, s_tile=s_tile_a)        # (B,S,k),(B,S,9)

    # group_points + max + mlp_cov + concat + mlp_f fused; the kernel writes the
    # channel-major (B, C_out, S) output directly (no trailing XLA transpose).
    # TODO(synk): f is still transposed to (B,N,C) host-side (one HBM pass); an
    # in-kernel per-batch (C,N)->(N,C) transpose into a persistent scratch could
    # remove it at the cost of an 'arbitrary' s axis.
    f_nc = jnp.transpose(f, (0, 2, 1))                               # (B, N, C)
    f_out = group_mlp(idx, f_nc, cov9, params, k=k, s_tile=s_tile_b)  # (B,Cout,S)
    return f_out, xyz_new


def init_params(c_in, c_cov, hidden, c_out):
    """Deterministic synthetic parameters (mlp_cov: 9->c_cov, mlp_f: (c_in+c_cov)->hidden->c_out)."""
    keys = jax.random.split(jax.random.PRNGKey(42), 6)

    def w(key, o, i):
        return jax.random.normal(key, (o, i), jnp.float32) * (1.0 / jnp.sqrt(i))

    return {
        "w_cov": w(keys[0], c_cov, 9),
        "b_cov": jax.random.normal(keys[1], (c_cov,), jnp.float32) * 0.01,
        "w_f1": w(keys[2], hidden, c_in + c_cov),
        "b_f1": jax.random.normal(keys[3], (hidden,), jnp.float32) * 0.01,
        "w_f2": w(keys[4], c_out, hidden),
        "b_f2": jax.random.normal(keys[5], (c_out,), jnp.float32) * 0.01,
    }


if __name__ == "__main__":
    B, C, N = 2, 4, 32        # batch, feature channels, input points
    NPOINTS, K = 8, 4         # sampled points, neighbors
    C_COV, HIDDEN, C_OUT = 16, 32, 32

    key = jax.random.PRNGKey(0)
    kf, kx = jax.random.split(key)
    f = jax.random.normal(kf, (B, C, N), jnp.float32)     # channel-first features
    xyz = jax.random.normal(kx, (B, N, 3), jnp.float32)   # point coordinates

    params = init_params(C, C_COV, HIDDEN, C_OUT)

    fwd = jax.jit(functools.partial(lfe_forward, npoints=NPOINTS, k=K))
    f_out, xyz_new = fwd(f, xyz, params)
    jax.block_until_ready((f_out, xyz_new))

    assert f_out.shape == (B, C_OUT, NPOINTS)
    assert xyz_new.shape == (B, NPOINTS, 3)
    print("KERNEL_OK")
</pallas_src>

<mosaic_0001>
module attributes {stable_mosaic.version = 11 : i64} {
  func.func @_knn_cov_kernel(%arg0: i32, %arg1: i32, %arg2: memref<1x8x3xf32, #tpu.memory_space<vmem>>, %arg3: memref<1x3x32xf32, #tpu.memory_space<vmem>>, %arg4: memref<1x8x4xi32, #tpu.memory_space<vmem>>, %arg5: memref<1x8x9xf32, #tpu.memory_space<vmem>>) attributes {dimension_semantics = [#tpu.dimension_semantics<parallel>, #tpu.dimension_semantics<parallel>], iteration_bounds = array<i64: 2, 1>, scalar_prefetch = 0 : i64, scratch_operands = 0 : i64, tpu.core_type = #tpu.core_type<tc>, window_params = [{transform_indices = @transform_0, window_bounds = array<i64: 1, 8, 3>}, {pipeline_mode = #tpu.pipeline_mode<synchronous>, transform_indices = @transform_1, window_bounds = array<i64: 1, 3, 32>}, {transform_indices = @transform_2, window_bounds = array<i64: 1, 8, 4>}, {transform_indices = @transform_3, window_bounds = array<i64: 1, 8, 9>}]} {
    %c0 = arith.constant 0 : index
    %c0_0 = arith.constant 0 : index
    %c0_1 = arith.constant 0 : index
    %0 = vector.load %arg2[%c0, %c0_0, %c0_1] : memref<1x8x3xf32, #tpu.memory_space<vmem>>, vector<1x8x3xf32>
    %1 = vector.shape_cast %0 : vector<1x8x3xf32> to vector<8x3xf32>
    %c0_2 = arith.constant 0 : index
    %c0_3 = arith.constant 0 : index
    %c0_4 = arith.constant 0 : index
    %2 = vector.load %arg3[%c0_2, %c0_3, %c0_4] : memref<1x3x32xf32, #tpu.memory_space<vmem>>, vector<1x3x32xf32>
    %3 = vector.shape_cast %2 : vector<1x3x32xf32> to vector<3x32xf32>
    %cst = arith.constant 0.000000e+00 : f32
    %4 = vector.broadcast %cst : f32 to vector<8x32xf32>
    %5 = vector.extract_strided_slice %1 {offsets = [0, 0], sizes = [8, 1], strides = [1, 1]} : vector<8x3xf32> to vector<8x1xf32>
    %6 = vector.extract_strided_slice %3 {offsets = [0, 0], sizes = [1, 32], strides = [1, 1]} : vector<3x32xf32> to vector<1x32xf32>
    %7 = vector.broadcast %5 : vector<8x1xf32> to vector<8x32xf32>
    %8 = vector.broadcast %6 : vector<1x32xf32> to vector<8x32xf32>
    %9 = arith.subf %7, %8 : vector<8x32xf32>
    %10 = arith.mulf %9, %9 : vector<8x32xf32>
    %11 = arith.addf %4, %10 : vector<8x32xf32>
    %12 = vector.extract_strided_slice %1 {offsets = [0, 1], sizes = [8, 1], strides = [1, 1]} : vector<8x3xf32> to vector<8x1xf32>
    %13 = vector.extract_strided_slice %3 {offsets = [1, 0], sizes = [1, 32], strides = [1, 1]} : vector<3x32xf32> to vector<1x32xf32>
    %14 = vector.broadcast %12 : vector<8x1xf32> to vector<8x32xf32>
    %15 = vector.broadcast %13 : vector<1x32xf32> to vector<8x32xf32>
    %16 = arith.subf %14, %15 : vector<8x32xf32>
    %17 = arith.mulf %16, %16 : vector<8x32xf32>
    %18 = arith.addf %11, %17 : vector<8x32xf32>
    %19 = vector.extract_strided_slice %1 {offsets = [0, 2], sizes = [8, 1], strides = [1, 1]} : vector<8x3xf32> to vector<8x1xf32>
    %20 = vector.extract_strided_slice %3 {offsets = [2, 0], sizes = [1, 32], strides = [1, 1]} : vector<3x32xf32> to vector<1x32xf32>
    %21 = vector.broadcast %19 : vector<8x1xf32> to vector<8x32xf32>
    %22 = vector.broadcast %20 : vector<1x32xf32> to vector<8x32xf32>
    %23 = arith.subf %21, %22 : vector<8x32xf32>
    %24 = arith.mulf %23, %23 : vector<8x32xf32>
    %25 = arith.addf %18, %24 : vector<8x32xf32>
    %26 = tpu.iota {dimensions = array<i32: 1>} : vector<8x32xi32>
    %cst_5 = arith.constant 0.000000e+00 : f32
    %27 = vector.broadcast %cst_5 : f32 to vector<8x32xf32>
    %28 = tpu.reduce_index %25 {axis = 1 : i32, kind = #tpu.reduction_kind<arg_min>} : vector<8x32xf32> -> vector<8xi32>
    %29 = vector.shape_cast %28 : vector<8xi32> to vector<8x1xi32>
    %c0_6 = arith.constant 0 : index
    %c0_7 = arith.constant 0 : index
    %c0_8 = arith.constant 0 : index
    %30 = vector.load %arg4[%c0_6, %c0_7, %c0_8] : memref<1x8x4xi32, #tpu.memory_space<vmem>>, vector<1x8x1xi32>
    %31 = vector.shape_cast %30 : vector<1x8x1xi32> to vector<8x1xi32>
    %32 = vector.shape_cast %29 : vector<8x1xi32> to vector<1x8x1xi32>
    tpu.vector_store %arg4[%c0_6, %c0_7, %c0_8], %32 {strides = array<i32>} : memref<1x8x4xi32, #tpu.memory_space<vmem>>, vector<1x8x1xi32>,
    %33 = vector.broadcast %29 : vector<8x1xi32> to vector<8x32xi32>
    %34 = arith.cmpi eq, %26, %33 : vector<8x32xi32>
    %35 = arith.extui %34 : vector<8x32xi1> to vector<8x32xi32>
    %36 = arith.sitofp %35 : vector<8x32xi32> to vector<8x32xf32>
    %37 = arith.addf %27, %36 : vector<8x32xf32>
    %cst_9 = arith.constant 1.000000e+30 : f32
    %38 = vector.broadcast %cst_9 : f32 to vector<8x32xf32>
    %39 = arith.select %34, %38, %25 : vector<8x32xi1>, vector<8x32xf32>
    %40 = tpu.reduce_index %39 {axis = 1 : i32, kind = #tpu.reduction_kind<arg_min>} : vector<8x32xf32> -> vector<8xi32>
    %41 = vector.shape_cast %40 : vector<8xi32> to vector<8x1xi32>
    %c0_10 = arith.constant 0 : index
    %c0_11 = arith.constant 0 : index
    %c1 = arith.constant 1 : index
    %42 = vector.load %arg4[%c0_10, %c0_11, %c1] : memref<1x8x4xi32, #tpu.memory_space<vmem>>, vector<1x8x1xi32>
    %43 = vector.shape_cast %42 : vector<1x8x1xi32> to vector<8x1xi32>
    %44 = vector.shape_cast %41 : vector<8x1xi32> to vector<1x8x1xi32>
    tpu.vector_store %arg4[%c0_10, %c0_11, %c1], %44 {strides = array<i32>} : memref<1x8x4xi32, #tpu.memory_space<vmem>>, vector<1x8x1xi32>,
    %45 = vector.broadcast %41 : vector<8x1xi32> to vector<8x32xi32>
    %46 = arith.cmpi eq, %26, %45 : vector<8x32xi32>
    %47 = arith.extui %46 : vector<8x32xi1> to vector<8x32xi32>
    %48 = arith.sitofp %47 : vector<8x32xi32> to vector<8x32xf32>
    %49 = arith.addf %37, %48 : vector<8x32xf32>
    %cst_12 = arith.constant 1.000000e+30 : f32
    %50 = vector.broadcast %cst_12 : f32 to vector<8x32xf32>
    %51 = arith.select %46, %50, %39 : vector<8x32xi1>, vector<8x32xf32>
    %52 = tpu.reduce_index %51 {axis = 1 : i32, kind = #tpu.reduction_kind<arg_min>} : vector<8x32xf32> -> vector<8xi32>
    %53 = vector.shape_cast %52 : vector<8xi32> to vector<8x1xi32>
    %c0_13 = arith.constant 0 : index
    %c0_14 = arith.constant 0 : index
    %c2 = arith.constant 2 : index
    %54 = vector.load %arg4[%c0_13, %c0_14, %c2] : memref<1x8x4xi32, #tpu.memory_space<vmem>>, vector<1x8x1xi32>
    %55 = vector.shape_cast %54 : vector<1x8x1xi32> to vector<8x1xi32>
    %56 = vector.shape_cast %53 : vector<8x1xi32> to vector<1x8x1xi32>
    tpu.vector_store %arg4[%c0_13, %c0_14, %c2], %56 {strides = array<i32>} : memref<1x8x4xi32, #tpu.memory_space<vmem>>, vector<1x8x1xi32>,
    %57 = vector.broadcast %53 : vector<8x1xi32> to vector<8x32xi32>
    %58 = arith.cmpi eq, %26, %57 : vector<8x32xi32>
    %59 = arith.extui %58 : vector<8x32xi1> to vector<8x32xi32>
    %60 = arith.sitofp %59 : vector<8x32xi32> to vector<8x32xf32>
    %61 = arith.addf %49, %60 : vector<8x32xf32>
    %cst_15 = arith.constant 1.000000e+30 : f32
    %62 = vector.broadcast %cst_15 : f32 to vector<8x32xf32>
    %63 = arith.select %58, %62, %51 : vector<8x32xi1>, vector<8x32xf32>
    %64 = tpu.reduce_index %63 {axis = 1 : i32, kind = #tpu.reduction_kind<arg_min>} : vector<8x32xf32> -> vector<8xi32>
    %65 = vector.shape_cast %64 : vector<8xi32> to vector<8x1xi32>
    %c0_16 = arith.constant 0 : index
    %c0_17 = arith.constant 0 : index
    %c3 = arith.constant 3 : index
    %66 = vector.load %arg4[%c0_16, %c0_17, %c3] : memref<1x8x4xi32, #tpu.memory_space<vmem>>, vector<1x8x1xi32>
    %67 = vector.shape_cast %66 : vector<1x8x1xi32> to vector<8x1xi32>
    %68 = vector.shape_cast %65 : vector<8x1xi32> to vector<1x8x1xi32>
    tpu.vector_store %arg4[%c0_16, %c0_17, %c3], %68 {strides = array<i32>} : memref<1x8x4xi32, #tpu.memory_space<vmem>>, vector<1x8x1xi32>,
    %69 = vector.broadcast %65 : vector<8x1xi32> to vector<8x32xi32>
    %70 = arith.cmpi eq, %26, %69 : vector<8x32xi32>
    %71 = arith.extui %70 : vector<8x32xi1> to vector<8x32xi32>
    %72 = arith.sitofp %71 : vector<8x32xi32> to vector<8x32xf32>
    %73 = arith.addf %61, %72 : vector<8x32xf32>
    %74 = vector.extract_strided_slice %3 {offsets = [0, 0], sizes = [1, 32], strides = [1, 1]} : vector<3x32xf32> to vector<1x32xf32>
    %75 = vector.extract_strided_slice %3 {offsets = [1, 0], sizes = [1, 32], strides = [1, 1]} : vector<3x32xf32> to vector<1x32xf32>
    %76 = vector.extract_strided_slice %3 {offsets = [2, 0], sizes = [1, 32], strides = [1, 1]} : vector<3x32xf32> to vector<1x32xf32>
    %77 = arith.mulf %74, %74 : vector<1x32xf32>
    %78 = arith.mulf %74, %75 : vector<1x32xf32>
    %79 = arith.mulf %74, %76 : vector<1x32xf32>
    %80 = arith.mulf %75, %75 : vector<1x32xf32>
    %81 = arith.mulf %75, %76 : vector<1x32xf32>
    %82 = arith.mulf %76, %76 : vector<1x32xf32>
    %83 = tpu.concatenate %74, %75, %76, %77, %78, %79, %80, %81, %82 in 0 : vector<1x32xf32>, vector<1x32xf32>, vector<1x32xf32>, vector<1x32xf32>, vector<1x32xf32>, vector<1x32xf32>, vector<1x32xf32>, vector<1x32xf32>, vector<1x32xf32> -> vector<9x32xf32>
    %cst_18 = arith.constant dense<0.000000e+00> : vector<8x9xf32>
    %84 = tpu.matmul %73, %83, %cst_18 {dimension_numbers = #tpu.dot_dimension_numbers<[1], [1], [0], [0], [0, 0, 1, 0], [], []>} : vector<8x32xf32>, vector<9x32xf32>, vector<8x9xf32> -> vector<8x9xf32>
    %cst_19 = arith.constant 2.500000e-01 : f32
    %85 = vector.broadcast %cst_19 : f32 to vector<8x9xf32>
    %86 = arith.mulf %84, %85 : vector<8x9xf32>
    %87 = vector.extract_strided_slice %86 {offsets = [0, 0], sizes = [8, 1], strides = [1, 1]} : vector<8x9xf32> to vector<8x1xf32>
    %88 = vector.extract_strided_slice %86 {offsets = [0, 1], sizes = [8, 1], strides = [1, 1]} : vector<8x9xf32> to vector<8x1xf32>
    %89 = vector.extract_strided_slice %86 {offsets = [0, 2], sizes = [8, 1], strides = [1, 1]} : vector<8x9xf32> to vector<8x1xf32>
    %90 = vector.extract_strided_slice %86 {offsets = [0, 3], sizes = [8, 1], strides = [1, 1]} : vector<8x9xf32> to vector<8x1xf32>
    %91 = vector.extract_strided_slice %86 {offsets = [0, 4], sizes = [8, 1], strides = [1, 1]} : vector<8x9xf32> to vector<8x1xf32>
    %92 = vector.extract_strided_slice %86 {offsets = [0, 5], sizes = [8, 1], strides = [1, 1]} : vector<8x9xf32> to vector<8x1xf32>
    %93 = vector.extract_strided_slice %86 {offsets = [0, 6], sizes = [8, 1], strides = [1, 1]} : vector<8x9xf32> to vector<8x1xf32>
    %94 = vector.extract_strided_slice %86 {offsets = [0, 7], sizes = [8, 1], strides = [1, 1]} : vector<8x9xf32> to vector<8x1xf32>
    %95 = vector.extract_strided_slice %86 {offsets = [0, 8], sizes = [8, 1], strides = [1, 1]} : vector<8x9xf32> to vector<8x1xf32>
    %96 = arith.mulf %87, %87 : vector<8x1xf32>
    %97 = arith.subf %90, %96 : vector<8x1xf32>
    %98 = arith.mulf %87, %88 : vector<8x1xf32>
    %99 = arith.subf %91, %98 : vector<8x1xf32>
    %100 = arith.mulf %87, %89 : vector<8x1xf32>
    %101 = arith.subf %92, %100 : vector<8x1xf32>
    %102 = arith.mulf %88, %88 : vector<8x1xf32>
    %103 = arith.subf %93, %102 : vector<8x1xf32>
    %104 = arith.mulf %88, %89 : vector<8x1xf32>
    %105 = arith.subf %94, %104 : vector<8x1xf32>
    %106 = arith.mulf %89, %89 : vector<8x1xf32>
    %107 = arith.subf %95, %106 : vector<8x1xf32>
    %108 = tpu.concatenate %97, %99, %101, %99, %103, %105, %101, %105, %107 in 1 : vector<8x1xf32>, vector<8x1xf32>, vector<8x1xf32>, vector<8x1xf32>, vector<8x1xf32>, vector<8x1xf32>, vector<8x1xf32>, vector<8x1xf32>, vector<8x1xf32> -> vector<8x9xf32>
    %c0_20 = arith.constant 0 : index
    %c0_21 = arith.constant 0 : index
    %c0_22 = arith.constant 0 : index
    %109 = vector.load %arg5[%c0_20, %c0_21, %c0_22] : memref<1x8x9xf32, #tpu.memory_space<vmem>>, vector<1x8x9xf32>
    %110 = vector.shape_cast %109 : vector<1x8x9xf32> to vector<8x9xf32>
    %111 = vector.shape_cast %108 : vector<8x9xf32> to vector<1x8x9xf32>
    tpu.vector_store %arg5[%c0_20, %c0_21, %c0_22], %111 {strides = array<i32>} : memref<1x8x9xf32, #tpu.memory_space<vmem>>, vector<1x8x9xf32>,
    return
  }
  func.func @transform_0(%arg0: i32, %arg1: i32) -> (i32, i32, i32) {
    %c0_i32 = arith.constant 0 : i32
    %c0_i32_0 = arith.constant 0 : i32
    return %arg0, %arg1, %c0_i32 : i32, i32, i32
  }
  func.func @transform_1(%arg0: i32, %arg1: i32) -> (i32, i32, i32) {
    %c0_i32 = arith.constant 0 : i32
    %c0_i32_0 = arith.constant 0 : i32
    %c0_i32_1 = arith.constant 0 : i32
    return %arg0, %c0_i32, %c0_i32_0 : i32, i32, i32
  }
  func.func @transform_2(%arg0: i32, %arg1: i32) -> (i32, i32, i32) {
    %c0_i32 = arith.constant 0 : i32
    %c0_i32_0 = arith.constant 0 : i32
    return %arg0, %arg1, %c0_i32 : i32, i32, i32
  }
  func.func @transform_3(%arg0: i32, %arg1: i32) -> (i32, i32, i32) {
    %c0_i32 = arith.constant 0 : i32
    %c0_i32_0 = arith.constant 0 : i32
    return %arg0, %arg1, %c0_i32 : i32, i32, i32
  }
}

module attributes {stable_mosaic.version = 11 : i64} {
  func.func @_group_mlp_kernel(%arg0: i32, %arg1: i32, %arg2: memref<64xi32, #tpu.memory_space<smem>>, %arg3: memref<1x32x4xf32, #tpu.memory_space<vmem>>, %arg4: memref<1x8x9xf32, #tpu.memory_space<vmem>>, %arg5: memref<9x16xf32, #tpu.memory_space<vmem>>, %arg6: memref<1x16xf32, #tpu.memory_space<vmem>>, %arg7: memref<4x32xf32, #tpu.memory_space<vmem>>, %arg8: memref<16x32xf32, #tpu.memory_space<vmem>>, %arg9: memref<1x32xf32, #tpu.memory_space<vmem>>, %arg10: memref<32x32xf32, #tpu.memory_space<vmem>>, %arg11: memref<32x1xf32, #tpu.memory_space<vmem>>, %arg12: memref<1x32x8xf32, #tpu.memory_space<vmem>>, %arg13: memref<8x4xf32, #tpu.memory_space<vmem>>) attributes {dimension_semantics = [#tpu.dimension_semantics<parallel>, #tpu.dimension_semantics<parallel>], iteration_bounds = array<i64: 2, 1>, scalar_prefetch = 1 : i64, scratch_operands = 1 : i64, tpu.core_type = #tpu.core_type<tc>, window_params = [{pipeline_mode = #tpu.pipeline_mode<synchronous>, transform_indices = @transform_0, window_bounds = array<i64: 1, 32, 4>}, {transform_indices = @transform_1, window_bounds = array<i64: 1, 8, 9>}, {pipeline_mode = #tpu.pipeline_mode<synchronous>, transform_indices = @transform_2, window_bounds = array<i64: 9, 16>}, {pipeline_mode = #tpu.pipeline_mode<synchronous>, transform_indices = @transform_3, window_bounds = array<i64: 1, 16>}, {pipeline_mode = #tpu.pipeline_mode<synchronous>, transform_indices = @transform_4, window_bounds = array<i64: 4, 32>}, {pipeline_mode = #tpu.pipeline_mode<synchronous>, transform_indices = @transform_5, window_bounds = array<i64: 16, 32>}, {pipeline_mode = #tpu.pipeline_mode<synchronous>, transform_indices = @transform_6, window_bounds = array<i64: 1, 32>}, {pipeline_mode = #tpu.pipeline_mode<synchronous>, transform_indices = @transform_7, window_bounds = array<i64: 32, 32>}, {pipeline_mode = #tpu.pipeline_mode<synchronous>, transform_indices = @transform_8, window_bounds = array<i64: 32, 1>}, {transform_indices = @transform_9, window_bounds = array<i64: 1, 32, 8>}]} {
    %c8_i32 = arith.constant 8 : i32
    %0 = arith.muli %arg0, %c8_i32 : i32
    %c8_i32_0 = arith.constant 8 : i32
    %1 = arith.muli %arg1, %c8_i32_0 : i32
    %2 = arith.addi %0, %1 : i32
    %c0_i32 = arith.constant 0 : i32
    %c8_i32_1 = arith.constant 8 : i32
    %3 = arith.muli %c0_i32, %c8_i32_1 : i32
    %4 = arith.addi %2, %3 : i32
    %c4_i32 = arith.constant 4 : i32
    %5 = arith.muli %4, %c4_i32 : i32
    %c0_i32_2 = arith.constant 0 : i32
    %6 = arith.addi %5, %c0_i32_2 : i32
    %7 = arith.index_cast %6 : i32 to index
    %8 = memref.load %arg2[%7] : memref<64xi32, #tpu.memory_space<smem>>
    %c0 = arith.constant 0 : index
    %9 = arith.index_cast %8 : i32 to index
    %c0_3 = arith.constant 0 : index
    %10 = vector.load %arg3[%c0, %9, %c0_3] : memref<1x32x4xf32, #tpu.memory_space<vmem>>, vector<1x1x4xf32>
    %11 = vector.shape_cast %10 : vector<1x1x4xf32> to vector<1x4xf32>
    %c1_i32 = arith.constant 1 : i32
    %12 = arith.addi %6, %c1_i32 : i32
    %13 = arith.index_cast %12 : i32 to index
    %14 = memref.load %arg2[%13] : memref<64xi32, #tpu.memory_space<smem>>
    %c0_4 = arith.constant 0 : index
    %15 = arith.index_cast %14 : i32 to index
    %c0_5 = arith.constant 0 : index
    %16 = vector.load %arg3[%c0_4, %15, %c0_5] : memref<1x32x4xf32, #tpu.memory_space<vmem>>, vector<1x1x4xf32>
    %17 = vector.shape_cast %16 : vector<1x1x4xf32> to vector<1x4xf32>
    %18 = arith.maximumf %11, %17 : vector<1x4xf32>
    %c2_i32 = arith.constant 2 : i32
    %19 = arith.addi %6, %c2_i32 : i32
    %20 = arith.index_cast %19 : i32 to index
    %21 = memref.load %arg2[%20] : memref<64xi32, #tpu.memory_space<smem>>
    %c0_6 = arith.constant 0 : index
    %22 = arith.index_cast %21 : i32 to index
    %c0_7 = arith.constant 0 : index
    %23 = vector.load %arg3[%c0_6, %22, %c0_7] : memref<1x32x4xf32, #tpu.memory_space<vmem>>, vector<1x1x4xf32>
    %24 = vector.shape_cast %23 : vector<1x1x4xf32> to vector<1x4xf32>
    %25 = arith.maximumf %18, %24 : vector<1x4xf32>
    %c3_i32 = arith.constant 3 : i32
    %26 = arith.addi %6, %c3_i32 : i32
    %27 = arith.index_cast %26 : i32 to index
    %28 = memref.load %arg2[%27] : memref<64xi32, #tpu.memory_space<smem>>
    %c0_8 = arith.constant 0 : index
    %29 = arith.index_cast %28 : i32 to index
    %c0_9 = arith.constant 0 : index
    %30 = vector.load %arg3[%c0_8, %29, %c0_9] : memref<1x32x4xf32, #tpu.memory_space<vmem>>, vector<1x1x4xf32>
    %31 = vector.shape_cast %30 : vector<1x1x4xf32> to vector<1x4xf32>
    %32 = arith.maximumf %25, %31 : vector<1x4xf32>
    %c4_i32_10 = arith.constant 4 : i32
    %33 = arith.addi %5, %c4_i32_10 : i32
    %34 = arith.index_cast %33 : i32 to index
    %35 = memref.load %arg2[%34] : memref<64xi32, #tpu.memory_space<smem>>
    %c0_11 = arith.constant 0 : index
    %36 = arith.index_cast %35 : i32 to index
    %c0_12 = arith.constant 0 : index
    %37 = vector.load %arg3[%c0_11, %36, %c0_12] : memref<1x32x4xf32, #tpu.memory_space<vmem>>, vector<1x1x4xf32>
    %38 = vector.shape_cast %37 : vector<1x1x4xf32> to vector<1x4xf32>
    %c1_i32_13 = arith.constant 1 : i32
    %39 = arith.addi %33, %c1_i32_13 : i32
    %40 = arith.index_cast %39 : i32 to index
    %41 = memref.load %arg2[%40] : memref<64xi32, #tpu.memory_space<smem>>
    %c0_14 = arith.constant 0 : index
    %42 = arith.index_cast %41 : i32 to index
    %c0_15 = arith.constant 0 : index
    %43 = vector.load %arg3[%c0_14, %42, %c0_15] : memref<1x32x4xf32, #tpu.memory_space<vmem>>, vector<1x1x4xf32>
    %44 = vector.shape_cast %43 : vector<1x1x4xf32> to vector<1x4xf32>
    %45 = arith.maximumf %38, %44 : vector<1x4xf32>
    %c2_i32_16 = arith.constant 2 : i32
    %46 = arith.addi %33, %c2_i32_16 : i32
    %47 = arith.index_cast %46 : i32 to index
    %48 = memref.load %arg2[%47] : memref<64xi32, #tpu.memory_space<smem>>
    %c0_17 = arith.constant 0 : index
    %49 = arith.index_cast %48 : i32 to index
    %c0_18 = arith.constant 0 : index
    %50 = vector.load %arg3[%c0_17, %49, %c0_18] : memref<1x32x4xf32, #tpu.memory_space<vmem>>, vector<1x1x4xf32>
    %51 = vector.shape_cast %50 : vector<1x1x4xf32> to vector<1x4xf32>
    %52 = arith.maximumf %45, %51 : vector<1x4xf32>
    %c3_i32_19 = arith.constant 3 : i32
    %53 = arith.addi %33, %c3_i32_19 : i32
    %54 = arith.index_cast %53 : i32 to index
    %55 = memref.load %arg2[%54] : memref<64xi32, #tpu.memory_space<smem>>
    %c0_20 = arith.constant 0 : index
    %56 = arith.index_cast %55 : i32 to index
    %c0_21 = arith.constant 0 : index
    %57 = vector.load %arg3[%c0_20, %56, %c0_21] : memref<1x32x4xf32, #tpu.memory_space<vmem>>, vector<1x1x4xf32>
    %58 = vector.shape_cast %57 : vector<1x1x4xf32> to vector<1x4xf32>
    %59 = arith.maximumf %52, %58 : vector<1x4xf32>
    %c8_i32_22 = arith.constant 8 : i32
    %60 = arith.addi %5, %c8_i32_22 : i32
    %61 = arith.index_cast %60 : i32 to index
    %62 = memref.load %arg2[%61] : memref<64xi32, #tpu.memory_space<smem>>
    %c0_23 = arith.constant 0 : index
    %63 = arith.index_cast %62 : i32 to index
    %c0_24 = arith.constant 0 : index
    %64 = vector.load %arg3[%c0_23, %63, %c0_24] : memref<1x32x4xf32, #tpu.memory_space<vmem>>, vector<1x1x4xf32>
    %65 = vector.shape_cast %64 : vector<1x1x4xf32> to vector<1x4xf32>
    %c1_i32_25 = arith.constant 1 : i32
    %66 = arith.addi %60, %c1_i32_25 : i32
    %67 = arith.index_cast %66 : i32 to index
    %68 = memref.load %arg2[%67] : memref<64xi32, #tpu.memory_space<smem>>
    %c0_26 = arith.constant 0 : index
    %69 = arith.index_cast %68 : i32 to index
    %c0_27 = arith.constant 0 : index
    %70 = vector.load %arg3[%c0_26, %69, %c0_27] : memref<1x32x4xf32, #tpu.memory_space<vmem>>, vector<1x1x4xf32>
    %71 = vector.shape_cast %70 : vector<1x1x4xf32> to vector<1x4xf32>
    %72 = arith.maximumf %65, %71 : vector<1x4xf32>
    %c2_i32_28 = arith.constant 2 : i32
    %73 = arith.addi %60, %c2_i32_28 : i32
    %74 = arith.index_cast %73 : i32 to index
    %75 = memref.load %arg2[%74] : memref<64xi32, #tpu.memory_space<smem>>
    %c0_29 = arith.constant 0 : index
    %76 = arith.index_cast %75 : i32 to index
    %c0_30 = arith.constant 0 : index
    %77 = vector.load %arg3[%c0_29, %76, %c0_30] : memref<1x32x4xf32, #tpu.memory_space<vmem>>, vector<1x1x4xf32>
    %78 = vector.shape_cast %77 : vector<1x1x4xf32> to vector<1x4xf32>
    %79 = arith.maximumf %72, %78 : vector<1x4xf32>
    %c3_i32_31 = arith.constant 3 : i32
    %80 = arith.addi %60, %c3_i32_31 : i32
    %81 = arith.index_cast %80 : i32 to index
    %82 = memref.load %arg2[%81] : memref<64xi32, #tpu.memory_space<smem>>
    %c0_32 = arith.constant 0 : index
    %83 = arith.index_cast %82 : i32 to index
    %c0_33 = arith.constant 0 : index
    %84 = vector.load %arg3[%c0_32, %83, %c0_33] : memref<1x32x4xf32, #tpu.memory_space<vmem>>, vector<1x1x4xf32>
    %85 = vector.shape_cast %84 : vector<1x1x4xf32> to vector<1x4xf32>
    %86 = arith.maximumf %79, %85 : vector<1x4xf32>
    %c12_i32 = arith.constant 12 : i32
    %87 = arith.addi %5, %c12_i32 : i32
    %88 = arith.index_cast %87 : i32 to index
    %89 = memref.load %arg2[%88] : memref<64xi32, #tpu.memory_space<smem>>
    %c0_34 = arith.constant 0 : index
    %90 = arith.index_cast %89 : i32 to index
    %c0_35 = arith.constant 0 : index
    %91 = vector.load %arg3[%c0_34, %90, %c0_35] : memref<1x32x4xf32, #tpu.memory_space<vmem>>, vector<1x1x4xf32>
    %92 = vector.shape_cast %91 : vector<1x1x4xf32> to vector<1x4xf32>
    %c1_i32_36 = arith.constant 1 : i32
    %93 = arith.addi %87, %c1_i32_36 : i32
    %94 = arith.index_cast %93 : i32 to index
    %95 = memref.load %arg2[%94] : memref<64xi32, #tpu.memory_space<smem>>
    %c0_37 = arith.constant 0 : index
    %96 = arith.index_cast %95 : i32 to index
    %c0_38 = arith.constant 0 : index
    %97 = vector.load %arg3[%c0_37, %96, %c0_38] : memref<1x32x4xf32, #tpu.memory_space<vmem>>, vector<1x1x4xf32>
    %98 = vector.shape_cast %97 : vector<1x1x4xf32> to vector<1x4xf32>
    %99 = arith.maximumf %92, %98 : vector<1x4xf32>
    %c2_i32_39 = arith.constant 2 : i32
    %100 = arith.addi %87, %c2_i32_39 : i32
    %101 = arith.index_cast %100 : i32 to index
    %102 = memref.load %arg2[%101] : memref<64xi32, #tpu.memory_space<smem>>
    %c0_40 = arith.constant 0 : index
    %103 = arith.index_cast %102 : i32 to index
    %c0_41 = arith.constant 0 : index
    %104 = vector.load %arg3[%c0_40, %103, %c0_41] : memref<1x32x4xf32, #tpu.memory_space<vmem>>, vector<1x1x4xf32>
    %105 = vector.shape_cast %104 : vector<1x1x4xf32> to vector<1x4xf32>
    %106 = arith.maximumf %99, %105 : vector<1x4xf32>
    %c3_i32_42 = arith.constant 3 : i32
    %107 = arith.addi %87, %c3_i32_42 : i32
    %108 = arith.index_cast %107 : i32 to index
    %109 = memref.load %arg2[%108] : memref<64xi32, #tpu.memory_space<smem>>
    %c0_43 = arith.constant 0 : index
    %110 = arith.index_cast %109 : i32 to index
    %c0_44 = arith.constant 0 : index
    %111 = vector.load %arg3[%c0_43, %110, %c0_44] : memref<1x32x4xf32, #tpu.memory_space<vmem>>, vector<1x1x4xf32>
    %112 = vector.shape_cast %111 : vector<1x1x4xf32> to vector<1x4xf32>
    %113 = arith.maximumf %106, %112 : vector<1x4xf32>
    %c16_i32 = arith.constant 16 : i32
    %114 = arith.addi %5, %c16_i32 : i32
    %115 = arith.index_cast %114 : i32 to index
    %116 = memref.load %arg2[%115] : memref<64xi32, #tpu.memory_space<smem>>
    %c0_45 = arith.constant 0 : index
    %117 = arith.index_cast %116 : i32 to index
    %c0_46 = arith.constant 0 : index
    %118 = vector.load %arg3[%c0_45, %117, %c0_46] : memref<1x32x4xf32, #tpu.memory_space<vmem>>, vector<1x1x4xf32>
    %119 = vector.shape_cast %118 : vector<1x1x4xf32> to vector<1x4xf32>
    %c1_i32_47 = arith.constant 1 : i32
    %120 = arith.addi %114, %c1_i32_47 : i32
    %121 = arith.index_cast %120 : i32 to index
    %122 = memref.load %arg2[%121] : memref<64xi32, #tpu.memory_space<smem>>
    %c0_48 = arith.constant 0 : index
    %123 = arith.index_cast %122 : i32 to index
    %c0_49 = arith.constant 0 : index
    %124 = vector.load %arg3[%c0_48, %123, %c0_49] : memref<1x32x4xf32, #tpu.memory_space<vmem>>, vector<1x1x4xf32>
    %125 = vector.shape_cast %124 : vector<1x1x4xf32> to vector<1x4xf32>
    %126 = arith.maximumf %119, %125 : vector<1x4xf32>
    %c2_i32_50 = arith.constant 2 : i32
    %127 = arith.addi %114, %c2_i32_50 : i32
    %128 = arith.index_cast %127 : i32 to index
    %129 = memref.load %arg2[%128] : memref<64xi32, #tpu.memory_space<smem>>
    %c0_51 = arith.constant 0 : index
    %130 = arith.index_cast %129 : i32 to index
    %c0_52 = arith.constant 0 : index
    %131 = vector.load %arg3[%c0_51, %130, %c0_52] : memref<1x32x4xf32, #tpu.memory_space<vmem>>, vector<1x1x4xf32>
    %132 = vector.shape_cast %131 : vector<1x1x4xf32> to vector<1x4xf32>
    %133 = arith.maximumf %126, %132 : vector<1x4xf32>
    %c3_i32_53 = arith.constant 3 : i32
    %134 = arith.addi %114, %c3_i32_53 : i32
    %135 = arith.index_cast %134 : i32 to index
    %136 = memref.load %arg2[%135] : memref<64xi32, #tpu.memory_space<smem>>
    %c0_54 = arith.constant 0 : index
    %137 = arith.index_cast %136 : i32 to index
    %c0_55 = arith.constant 0 : index
    %138 = vector.load %arg3[%c0_54, %137, %c0_55] : memref<1x32x4xf32, #tpu.memory_space<vmem>>, vector<1x1x4xf32>
    %139 = vector.shape_cast %138 : vector<1x1x4xf32> to vector<1x4xf32>
    %140 = arith.maximumf %133, %139 : vector<1x4xf32>
    %c20_i32 = arith.constant 20 : i32
    %141 = arith.addi %5, %c20_i32 : i32
    %142 = arith.index_cast %141 : i32 to index
    %143 = memref.load %arg2[%142] : memref<64xi32, #tpu.memory_space<smem>>
    %c0_56 = arith.constant 0 : index
    %144 = arith.index_cast %143 : i32 to index
    %c0_57 = arith.constant 0 : index
    %145 = vector.load %arg3[%c0_56, %144, %c0_57] : memref<1x32x4xf32, #tpu.memory_space<vmem>>, vector<1x1x4xf32>
    %146 = vector.shape_cast %145 : vector<1x1x4xf32> to vector<1x4xf32>
    %c1_i32_58 = arith.constant 1 : i32
    %147 = arith.addi %141, %c1_i32_58 : i32
    %148 = arith.index_cast %147 : i32 to index
    %149 = memref.load %arg2[%148] : memref<64xi32, #tpu.memory_space<smem>>
    %c0_59 = arith.constant 0 : index
    %150 = arith.index_cast %149 : i32 to index
    %c0_60 = arith.constant 0 : index
    %151 = vector.load %arg3[%c0_59, %150, %c0_60] : memref<1x32x4xf32, #tpu.memory_space<vmem>>, vector<1x1x4xf32>
    %152 = vector.shape_cast %151 : vector<1x1x4xf32> to vector<1x4xf32>
    %153 = arith.maximumf %146, %152 : vector<1x4xf32>
    %c2_i32_61 = arith.constant 2 : i32
    %154 = arith.addi %141, %c2_i32_61 : i32
    %155 = arith.index_cast %154 : i32 to index
    %156 = memref.load %arg2[%155] : memref<64xi32, #tpu.memory_space<smem>>
    %c0_62 = arith.constant 0 : index
    %157 = arith.index_cast %156 : i32 to index
    %c0_63 = arith.constant 0 : index
    %158 = vector.load %arg3[%c0_62, %157, %c0_63] : memref<1x32x4xf32, #tpu.memory_space<vmem>>, vector<1x1x4xf32>
    %159 = vector.shape_cast %158 : vector<1x1x4xf32> to vector<1x4xf32>
    %160 = arith.maximumf %153, %159 : vector<1x4xf32>
    %c3_i32_64 = arith.constant 3 : i32
    %161 = arith.addi %141, %c3_i32_64 : i32
    %162 = arith.index_cast %161 : i32 to index
    %163 = memref.load %arg2[%162] : memref<64xi32, #tpu.memory_space<smem>>
    %c0_65 = arith.constant 0 : index
    %164 = arith.index_cast %163 : i32 to index
    %c0_66 = arith.constant 0 : index
    %165 = vector.load %arg3[%c0_65, %164, %c0_66] : memref<1x32x4xf32, #tpu.memory_space<vmem>>, vector<1x1x4xf32>
    %166 = vector.shape_cast %165 : vector<1x1x4xf32> to vector<1x4xf32>
    %167 = arith.maximumf %160, %166 : vector<1x4xf32>
    %c24_i32 = arith.constant 24 : i32
    %168 = arith.addi %5, %c24_i32 : i32
    %169 = arith.index_cast %168 : i32 to index
    %170 = memref.load %arg2[%169] : memref<64xi32, #tpu.memory_space<smem>>
    %c0_67 = arith.constant 0 : index
    %171 = arith.index_cast %170 : i32 to index
    %c0_68 = arith.constant 0 : index
    %172 = vector.load %arg3[%c0_67, %171, %c0_68] : memref<1x32x4xf32, #tpu.memory_space<vmem>>, vector<1x1x4xf32>
    %173 = vector.shape_cast %172 : vector<1x1x4xf32> to vector<1x4xf32>
    %c1_i32_69 = arith.constant 1 : i32
    %174 = arith.addi %168, %c1_i32_69 : i32
    %175 = arith.index_cast %174 : i32 to index
    %176 = memref.load %arg2[%175] : memref<64xi32, #tpu.memory_space<smem>>
    %c0_70 = arith.constant 0 : index
    %177 = arith.index_cast %176 : i32 to index
    %c0_71 = arith.constant 0 : index
    %178 = vector.load %arg3[%c0_70, %177, %c0_71] : memref<1x32x4xf32, #tpu.memory_space<vmem>>, vector<1x1x4xf32>
    %179 = vector.shape_cast %178 : vector<1x1x4xf32> to vector<1x4xf32>
    %180 = arith.maximumf %173, %179 : vector<1x4xf32>
    %c2_i32_72 = arith.constant 2 : i32
    %181 = arith.addi %168, %c2_i32_72 : i32
    %182 = arith.index_cast %181 : i32 to index
    %183 = memref.load %arg2[%182] : memref<64xi32, #tpu.memory_space<smem>>
    %c0_73 = arith.constant 0 : index
    %184 = arith.index_cast %183 : i32 to index
    %c0_74 = arith.constant 0 : index
    %185 = vector.load %arg3[%c0_73, %184, %c0_74] : memref<1x32x4xf32, #tpu.memory_space<vmem>>, vector<1x1x4xf32>
    %186 = vector.shape_cast %185 : vector<1x1x4xf32> to vector<1x4xf32>
    %187 = arith.maximumf %180, %186 : vector<1x4xf32>
    %c3_i32_75 = arith.constant 3 : i32
    %188 = arith.addi %168, %c3_i32_75 : i32
    %189 = arith.index_cast %188 : i32 to index
    %190 = memref.load %arg2[%189] : memref<64xi32, #tpu.memory_space<smem>>
    %c0_76 = arith.constant 0 : index
    %191 = arith.index_cast %190 : i32 to index
    %c0_77 = arith.constant 0 : index
    %192 = vector.load %arg3[%c0_76, %191, %c0_77] : memref<1x32x4xf32, #tpu.memory_space<vmem>>, vector<1x1x4xf32>
    %193 = vector.shape_cast %192 : vector<1x1x4xf32> to vector<1x4xf32>
    %194 = arith.maximumf %187, %193 : vector<1x4xf32>
    %c28_i32 = arith.constant 28 : i32
    %195 = arith.addi %5, %c28_i32 : i32
    %196 = arith.index_cast %195 : i32 to index
    %197 = memref.load %arg2[%196] : memref<64xi32, #tpu.memory_space<smem>>
    %c0_78 = arith.constant 0 : index
    %198 = arith.index_cast %197 : i32 to index
    %c0_79 = arith.constant 0 : index
    %199 = vector.load %arg3[%c0_78, %198, %c0_79] : memref<1x32x4xf32, #tpu.memory_space<vmem>>, vector<1x1x4xf32>
    %200 = vector.shape_cast %199 : vector<1x1x4xf32> to vector<1x4xf32>
    %c1_i32_80 = arith.constant 1 : i32
    %201 = arith.addi %195, %c1_i32_80 : i32
    %202 = arith.index_cast %201 : i32 to index
    %203 = memref.load %arg2[%202] : memref<64xi32, #tpu.memory_space<smem>>
    %c0_81 = arith.constant 0 : index
    %204 = arith.index_cast %203 : i32 to index
    %c0_82 = arith.constant 0 : index
    %205 = vector.load %arg3[%c0_81, %204, %c0_82] : memref<1x32x4xf32, #tpu.memory_space<vmem>>, vector<1x1x4xf32>
    %206 = vector.shape_cast %205 : vector<1x1x4xf32> to vector<1x4xf32>
    %207 = arith.maximumf %200, %206 : vector<1x4xf32>
    %c2_i32_83 = arith.constant 2 : i32
    %208 = arith.addi %195, %c2_i32_83 : i32
    %209 = arith.index_cast %208 : i32 to index
    %210 = memref.load %arg2[%209] : memref<64xi32, #tpu.memory_space<smem>>
    %c0_84 = arith.constant 0 : index
    %211 = arith.index_cast %210 : i32 to index
    %c0_85 = arith.constant 0 : index
    %212 = vector.load %arg3[%c0_84, %211, %c0_85] : memref<1x32x4xf32, #tpu.memory_space<vmem>>, vector<1x1x4xf32>
    %213 = vector.shape_cast %212 : vector<1x1x4xf32> to vector<1x4xf32>
    %214 = arith.maximumf %207, %213 : vector<1x4xf32>
    %c3_i32_86 = arith.constant 3 : i32
    %215 = arith.addi %195, %c3_i32_86 : i32
    %216 = arith.index_cast %215 : i32 to index
    %217 = memref.load %arg2[%216] : memref<64xi32, #tpu.memory_space<smem>>
    %c0_87 = arith.constant 0 : index
    %218 = arith.index_cast %217 : i32 to index
    %c0_88 = arith.constant 0 : index
    %219 = vector.load %arg3[%c0_87, %218, %c0_88] : memref<1x32x4xf32, #tpu.memory_space<vmem>>, vector<1x1x4xf32>
    %220 = vector.shape_cast %219 : vector<1x1x4xf32> to vector<1x4xf32>
    %221 = arith.maximumf %214, %220 : vector<1x4xf32>
    %c8_i32_89 = arith.constant 8 : i32
    %222 = arith.muli %c0_i32, %c8_i32_89 : i32
    %223 = tpu.assume_multiple %222, 8 : i32
    %224 = tpu.concatenate %32, %59, %86, %113, %140, %167, %194, %221 in 0 : vector<1x4xf32>, vector<1x4xf32>, vector<1x4xf32>, vector<1x4xf32>, vector<1x4xf32>, vector<1x4xf32>, vector<1x4xf32>, vector<1x4xf32> -> vector<8x4xf32>
    %225 = arith.index_cast %223 : i32 to index
    %c0_90 = arith.constant 0 : index
    %226 = vector.load %arg13[%225, %c0_90] : memref<8x4xf32, #tpu.memory_space<vmem>>, vector<8x4xf32>
    tpu.vector_store %arg13[%225, %c0_90], %224 {strides = array<i32>} : memref<8x4xf32, #tpu.memory_space<vmem>>, vector<8x4xf32>,
    %c1_i32_91 = arith.constant 1 : i32
    %c0_92 = arith.constant 0 : index
    %c0_93 = arith.constant 0 : index
    %c0_94 = arith.constant 0 : index
    %227 = vector.load %arg4[%c0_92, %c0_93, %c0_94] : memref<1x8x9xf32, #tpu.memory_space<vmem>>, vector<1x8x9xf32>
    %228 = vector.shape_cast %227 : vector<1x8x9xf32> to vector<8x9xf32>
    %c0_95 = arith.constant 0 : index
    %c0_96 = arith.constant 0 : index
    %229 = vector.load %arg5[%c0_95, %c0_96] : memref<9x16xf32, #tpu.memory_space<vmem>>, vector<9x16xf32>
    %cst = arith.constant dense<0.000000e+00> : vector<8x16xf32>
    %230 = tpu.matmul %228, %229, %cst {dimension_numbers = #tpu.dot_dimension_numbers<[1], [0], [0], [1], [0, 0, 1, 1], [], []>} : vector<8x9xf32>, vector<9x16xf32>, vector<8x16xf32> -> vector<8x16xf32>
    %c0_97 = arith.constant 0 : index
    %c0_98 = arith.constant 0 : index
    %231 = vector.load %arg6[%c0_97, %c0_98] : memref<1x16xf32, #tpu.memory_space<vmem>>, vector<1x16xf32>
    %232 = vector.broadcast %231 : vector<1x16xf32> to vector<8x16xf32>
    %233 = arith.addf %230, %232 : vector<8x16xf32>
    %cst_99 = arith.constant 0.000000e+00 : f32
    %234 = vector.broadcast %cst_99 : f32 to vector<8x16xf32>
    %235 = arith.maximumf %233, %234 : vector<8x16xf32>
    %c0_100 = arith.constant 0 : index
    %c0_101 = arith.constant 0 : index
    %236 = vector.load %arg13[%c0_100, %c0_101] : memref<8x4xf32, #tpu.memory_space<vmem>>, vector<8x4xf32>
    %c0_102 = arith.constant 0 : index
    %c0_103 = arith.constant 0 : index
    %237 = vector.load %arg7[%c0_102, %c0_103] : memref<4x32xf32, #tpu.memory_space<vmem>>, vector<4x32xf32>
    %cst_104 = arith.constant dense<0.000000e+00> : vector<8x32xf32>
    %238 = tpu.matmul %236, %237, %cst_104 {dimension_numbers = #tpu.dot_dimension_numbers<[1], [0], [0], [1], [0, 0, 1, 1], [], []>} : vector<8x4xf32>, vector<4x32xf32>, vector<8x32xf32> -> vector<8x32xf32>
    %c0_105 = arith.constant 0 : index
    %c0_106 = arith.constant 0 : index
    %239 = vector.load %arg8[%c0_105, %c0_106] : memref<16x32xf32, #tpu.memory_space<vmem>>, vector<16x32xf32>
    %cst_107 = arith.constant dense<0.000000e+00> : vector<8x32xf32>
    %240 = tpu.matmul %235, %239, %cst_107 {dimension_numbers = #tpu.dot_dimension_numbers<[1], [0], [0], [1], [0, 0, 1, 1], [], []>} : vector<8x16xf32>, vector<16x32xf32>, vector<8x32xf32> -> vector<8x32xf32>
    %241 = arith.addf %238, %240 : vector<8x32xf32>
    %c0_108 = arith.constant 0 : index
    %c0_109 = arith.constant 0 : index
    %242 = vector.load %arg9[%c0_108, %c0_109] : memref<1x32xf32, #tpu.memory_space<vmem>>, vector<1x32xf32>
    %243 = vector.broadcast %242 : vector<1x32xf32> to vector<8x32xf32>
    %244 = arith.addf %241, %243 : vector<8x32xf32>
    %cst_110 = arith.constant 0.000000e+00 : f32
    %245 = vector.broadcast %cst_110 : f32 to vector<8x32xf32>
    %246 = arith.maximumf %244, %245 : vector<8x32xf32>
    %c0_111 = arith.constant 0 : index
    %c0_112 = arith.constant 0 : index
    %247 = vector.load %arg10[%c0_111, %c0_112] : memref<32x32xf32, #tpu.memory_space<vmem>>, vector<32x32xf32>
    %cst_113 = arith.constant dense<0.000000e+00> : vector<32x8xf32>
    %248 = tpu.matmul %247, %246, %cst_113 {dimension_numbers = #tpu.dot_dimension_numbers<[1], [1], [0], [0], [0, 0, 1, 0], [], []>} : vector<32x32xf32>, vector<8x32xf32>, vector<32x8xf32> -> vector<32x8xf32>
    %c0_114 = arith.constant 0 : index
    %c0_115 = arith.constant 0 : index
    %249 = vector.load %arg11[%c0_114, %c0_115] : memref<32x1xf32, #tpu.memory_space<vmem>>, vector<32x1xf32>
    %250 = vector.broadcast %249 : vector<32x1xf32> to vector<32x8xf32>
    %251 = arith.addf %248, %250 : vector<32x8xf32>
    %cst_116 = arith.constant 0.000000e+00 : f32
    %252 = vector.broadcast %cst_116 : f32 to vector<32x8xf32>
    %253 = arith.maximumf %251, %252 : vector<32x8xf32>
    %c0_117 = arith.constant 0 : index
    %c0_118 = arith.constant 0 : index
    %c0_119 = arith.constant 0 : index
    %254 = vector.load %arg12[%c0_117, %c0_118, %c0_119] : memref<1x32x8xf32, #tpu.memory_space<vmem>>, vector<1x32x8xf32>
    %255 = vector.shape_cast %254 : vector<1x32x8xf32> to vector<32x8xf32>
    %256 = vector.shape_cast %253 : vector<32x8xf32> to vector<1x32x8xf32>
    tpu.vector_store %arg12[%c0_117, %c0_118, %c0_119], %256 {strides = array<i32>} : memref<1x32x8xf32, #tpu.memory_space<vmem>>, vector<1x32x8xf32>,
    return
  }
  func.func @transform_0(%arg0: i32, %arg1: i32, %arg2: memref<64xi32, #tpu.memory_space<smem>>) -> (i32, i32, i32) {
    %c0_i32 = arith.constant 0 : i32
    %c0_i32_0 = arith.constant 0 : i32
    %c0_i32_1 = arith.constant 0 : i32
    return %arg0, %c0_i32, %c0_i32_0 : i32, i32, i32
  }
  func.func @transform_1(%arg0: i32, %arg1: i32, %arg2: memref<64xi32, #tpu.memory_space<smem>>) -> (i32, i32, i32) {
    %c0_i32 = arith.constant 0 : i32
    %c0_i32_0 = arith.constant 0 : i32
    return %arg0, %arg1, %c0_i32 : i32, i32, i32
  }
  func.func @transform_2(%arg0: i32, %arg1: i32, %arg2: memref<64xi32, #tpu.memory_space<smem>>) -> (i32, i32) {
    %c0_i32 = arith.constant 0 : i32
    %c0_i32_0 = arith.constant 0 : i32
    %c0_i32_1 = arith.constant 0 : i32
    return %c0_i32, %c0_i32_0 : i32, i32
  }
  func.func @transform_3(%arg0: i32, %arg1: i32, %arg2: memref<64xi32, #tpu.memory_space<smem>>) -> (i32, i32) {
    %c0_i32 = arith.constant 0 : i32
    %c0_i32_0 = arith.constant 0 : i32
    %c0_i32_1 = arith.constant 0 : i32
    return %c0_i32, %c0_i32_0 : i32, i32
  }
  func.func @transform_4(%arg0: i32, %arg1: i32, %arg2: memref<64xi32, #tpu.memory_space<smem>>) -> (i32, i32) {
    %c0_i32 = arith.constant 0 : i32
    %c0_i32_0 = arith.constant 0 : i32
    %c0_i32_1 = arith.constant 0 : i32
    return %c0_i32, %c0_i32_0 : i32, i32
  }
  func.func @transform_5(%arg0: i32, %arg1: i32, %arg2: memref<64xi32, #tpu.memory_space<smem>>) -> (i32, i32) {
    %c0_i32 = arith.constant 0 : i32
    %c0_i32_0 = arith.constant 0 : i32
    %c0_i32_1 = arith.constant 0 : i32
    return %c0_i32, %c0_i32_0 : i32, i32
  }
  func.func @transform_6(%arg0: i32, %arg1: i32, %arg2: memref<64xi32, #tpu.memory_space<smem>>) -> (i32, i32) {
    %c0_i32 = arith.constant 0 : i32
    %c0_i32_0 = arith.constant 0 : i32
    %c0_i32_1 = arith.constant 0 : i32
    return %c0_i32, %c0_i32_0 : i32, i32
  }
  func.func @transform_7(%arg0: i32, %arg1: i32, %arg2: memref<64xi32, #tpu.memory_space<smem>>) -> (i32, i32) {
    %c0_i32 = arith.constant 0 : i32
    %c0_i32_0 = arith.constant 0 : i32
    %c0_i32_1 = arith.constant 0 : i32
    return %c0_i32, %c0_i32_0 : i32, i32
  }
  func.func @transform_8(%arg0: i32, %arg1: i32, %arg2: memref<64xi32, #tpu.memory_space<smem>>) -> (i32, i32) {
    %c0_i32 = arith.constant 0 : i32
    %c0_i32_0 = arith.constant 0 : i32
    %c0_i32_1 = arith.constant 0 : i32
    return %c0_i32, %c0_i32_0 : i32, i32
  }
  func.func @transform_9(%arg0: i32, %arg1: i32, %arg2: memref<64xi32, #tpu.memory_space<smem>>) -> (i32, i32, i32) {
    %c0_i32 = arith.constant 0 : i32
    %c0_i32_0 = arith.constant 0 : i32
    return %arg0, %c0_i32, %arg1 : i32, i32, i32
  }
}

</mosaic_0001>

<llo_original>
// kernel: custom-call.4
$region0: #{custom-call.4}
  %s0 = inlined_call_operand.vmem [shape: f32[2,32], index: 0, kind: output, shape index: {}]

// kernel: lfe_forward.2
$region0: #{lfe_forward.2}
  #allocation0 [shape = 'u32[]', space=smem, size = 0x4, offset = 0x4, fixed_abs, tag = 'smem constant byte address 0x4 - core index']
  #allocation1 [shape = 'u32[144,128]{1,0:T(1,128)}', space=vmem, size = 0x12000, scoped, tag = 'internal scratch']
  %s0 = inlined_call_operand.vmem [shape: f32[2,8,3], index: 0, kind: input, shape index: {}]
  %s1 = inlined_call_operand.vmem [shape: f32[2,3,32], index: 1, kind: input, shape index: {}]
  %s2 = inlined_call_operand.vmem [shape: s32[2,8,4], index: 2, kind: output, shape index: {0}]
  %s3 = inlined_call_operand.vmem [shape: f32[2,8,9], index: 3, kind: output, shape index: {1}]
  %4 = xla_tuple %s2, %s3
  %s5 = sld [smem:[#allocation0]]
  $region49: #{lfe_forward.2} parent=0
    _
  %s7 = ssub.s32 1, %s5
  %s8 = scalar_select 0, %s7, %s5
  loop: start=0, step=1, limit=4
  $region2: #{lfe_forward.2} parent=0 // loop_pre_header
    _
  $region3: #{lfe_forward.2} parent=0 // loop_header
    %s10 = sphi 0, %s14
    %p11 = scmp.ge.s32.totalorder %s10, 4
    %s17 = sphi 0, %s29
    %s18 = sphi 0, %s25
    %s19 = sphi 0, %s17
    %s20 = sphi 0, %s18
    %s21 = sphi 0, %s19
    %s22 = sphi 0, %s20
    %s34 = sphi 0, %s36
    %s37 = sphi 0, %s34
    %s38 = sphi 0, %s37
    %s54 = sphi 0, %s38
    %s60 = sphi 0, %s62
    %s63 = sphi 0, %s60
    %s64 = sphi 0, %s63
    %s80 = sphi 0, %s64
    %s88 = sphi 0, %s90
    %s91 = sphi 0, %s88
    %s92 = sphi 0, %s91
    %s108 = sphi 0, %s92
    %s116 = sphi 0, %s118
    %s119 = sphi 0, %s116
    %s120 = sphi 0, %s119
    %s136 = sphi 0, %s120
  $region4: #{lfe_forward.2} parent=0 // loop_header_branch
    %13 = sbr.rel (%p11) target = $region8
  $region5: #{lfe_forward.2} parent=0 // loop_body
    %s15 = ssub.s32 %s10, 1
    %s16 = ssub.s32 %s10, 2
    %s23 = sadd.s32 1, %s18
    %p24 = scmp.ge.s32.totalorder %s23, 1
    %s25 = scalar_select %p24, 0, %s23
    %s26 = sadd.s32 1, %s17
    %s27 = scalar_select %p24, %s26, %s17
    %p28 = scmp.ge.s32.totalorder %s27, 2
    %s29 = scalar_select %p28, 0, %s27
    %s30 = ssub.s32 %s17, %s29
    %s31 = ssub.s32 %s18, %s25
    %s32 = sor.u32 %s30, %s31
    %p33 = scmp.eq.s32.totalorder %s32, 0
    %s35 = sadd.s32 %s34, 1
    %s36 = scalar_select %p33, %s34, %s35
    %p39 = pneg %p33
    %p40 = scmp.eq.s32.totalorder %s10, 1
    %p41 = por %p39, %p40
    %p42 = scmp.ne.s32.totalorder %s34, %s37
    %p43 = scmp.eq.s32.totalorder %s10, 0
    %p44 = por %p42, %p43
    %p45 = scmp.ne.s32.totalorder %s34, %s37
    %p46 = scmp.eq.s32.totalorder %s15, 1
    %p47 = por %p45, %p46
    %p48 = scmp.ne.s32.totalorder %s37, %s38
    %p49 = scmp.eq.s32.totalorder %s15, 0
    %p50 = por %p48, %p49
    %p51 = scmp.ne.s32.totalorder %s37, %s38
    %p52 = scmp.eq.s32.totalorder %s16, 1
    %p53 = por %p51, %p52
    %p55 = scmp.ne.s32.totalorder %s38, %s54
    %p56 = scmp.eq.s32.totalorder %s16, 0
    %p57 = por %p55, %p56
    %s58 = ssub.s32 %s17, %s29
    %p59 = scmp.eq.s32.totalorder %s58, 0
    %s61 = sadd.s32 %s60, 1
    %s62 = scalar_select %p59, %s60, %s61
    %p65 = pneg %p59
    %p66 = scmp.eq.s32.totalorder %s10, 1
    %p67 = por %p65, %p66
    %p68 = scmp.ne.s32.totalorder %s60, %s63
    %p69 = scmp.eq.s32.totalorder %s10, 0
    %p70 = por %p68, %p69
    %p71 = scmp.ne.s32.totalorder %s60, %s63
    %p72 = scmp.eq.s32.totalorder %s15, 1
    %p73 = por %p71, %p72
    %p74 = scmp.ne.s32.totalorder %s63, %s64
    %p75 = scmp.eq.s32.totalorder %s15, 0
    %p76 = por %p74, %p75
    %p77 = scmp.ne.s32.totalorder %s63, %s64
    %p78 = scmp.eq.s32.totalorder %s16, 1
    %p79 = por %p77, %p78
    %p81 = scmp.ne.s32.totalorder %s64, %s80
    %p82 = scmp.eq.s32.totalorder %s16, 0
    %p83 = por %p81, %p82
    %s84 = ssub.s32 %s17, %s29
    %s85 = ssub.s32 %s18, %s25
    %s86 = sor.u32 %s84, %s85
    %p87 = scmp.eq.s32.totalorder %s86, 0
    %s89 = sadd.s32 %s88, 1
    %s90 = scalar_select %p87, %s88, %s89
    %p93 = pneg %p87
    %p94 = scmp.eq.s32.totalorder %s10, 1
    %p95 = por %p93, %p94
    %p96 = scmp.ne.s32.totalorder %s88, %s91
    %p97 = scmp.eq.s32.totalorder %s10, 0
    %p98 = por %p96, %p97
    %p99 = scmp.ne.s32.totalorder %s88, %s91
    %p100 = scmp.eq.s32.totalorder %s15, 1
    %p101 = por %p99, %p100
    %p102 = scmp.ne.s32.totalorder %s91, %s92
    %p103 = scmp.eq.s32.totalorder %s15, 0
    %p104 = por %p102, %p103
    %p105 = scmp.ne.s32.totalorder %s91, %s92
    %p106 = scmp.eq.s32.totalorder %s16, 1
    %p107 = por %p105, %p106
    %p109 = scmp.ne.s32.totalorder %s92, %s108
    %p110 = scmp.eq.s32.totalorder %s16, 0
    %p111 = por %p109, %p110
    %s112 = ssub.s32 %s17, %s29
    %s113 = ssub.s32 %s18, %s25
    %s114 = sor.u32 %s112, %s113
    %p115 = scmp.eq.s32.totalorder %s114, 0
    %s117 = sadd.s32 %s116, 1
    %s118 = scalar_select %p115, %s116, %s117
    %p121 = pneg %p115
    %p122 = scmp.eq.s32.totalorder %s10, 1
    %p123 = por %p121, %p122
    %p124 = scmp.ne.s32.totalorder %s116, %s119
    %p125 = scmp.eq.s32.totalorder %s10, 0
    %p126 = por %p124, %p125
    %p127 = scmp.ne.s32.totalorder %s116, %s119
    %p128 = scmp.eq.s32.totalorder %s15, 1
    %p129 = por %p127, %p128
    %p130 = scmp.ne.s32.totalorder %s119, %s120
    %p131 = scmp.eq.s32.totalorder %s15, 0
    %p132 = por %p130, %p131
    %p133 = scmp.ne.s32.totalorder %s119, %s120
    %p134 = scmp.eq.s32.totalorder %s16, 1
    %p135 = por %p133, %p134
    %p137 = scmp.ne.s32.totalorder %s120, %s136
    %p138 = scmp.eq.s32.totalorder %s16, 0
    %p139 = por %p137, %p138
    %p140 = scmp.le.s32.totalorder 1, %s10
    %p141 = scmp.lt.s32.totalorder %s10, 3
    %p142 = pnand %p140, %p141
    %p143 = pneg %p142
    // Predicated region
    $region9: #{lfe_forward.2} parent=5 // pred_check
      _
    $region10: #{lfe_forward.2} parent=5 // pred_check_branch
      %145 = sbr.rel (%p142) target = $region12
    $region11: #{lfe_forward.2} parent=5 // pred_region
      %s146 = ssub.s32 %s10, 1
      // Predicated region
      $region13: #{lfe_forward.2} parent=11 // pred_check
        %p147 = pneg %p76
      $region14: #{lfe_forward.2} parent=11 // pred_check_branch
        %149 = sbr.rel (%p147) target = $region16
      $region15: #{lfe_forward.2} parent=11 // pred_region
        %p150 = scmp.lt.s32.totalorder %s19, 1
        %s151 = scalar_select %p150, %s19, 1
        %s152 = smul.addr %s151, 4
        %s153 = scalar_lea.vmem %s1, %s152
      $region16: #{lfe_forward.2} parent=11 // pred_fallthru
        _
    $region12: #{lfe_forward.2} parent=5 // pred_fallthru
      _
    %p154 = scmp.lt.s32.totalorder %s10, 2
    // Predicated region
    $region17: #{lfe_forward.2} parent=5 // pred_check
      %p155 = pneg %p154
    $region18: #{lfe_forward.2} parent=5 // pred_check_branch
      %157 = sbr.rel (%p155) target = $region20
    $region19: #{lfe_forward.2} parent=5 // pred_region
      // Predicated region
      $region21: #{lfe_forward.2} parent=19 // pred_check
        %p158 = pneg %p44
      $region22: #{lfe_forward.2} parent=19 // pred_check_branch
        %160 = sbr.rel (%p158) target = $region24
      $region23: #{lfe_forward.2} parent=19 // pred_region
        %p161 = scmp.lt.s32.totalorder %s17, 1
        %s162 = scalar_select %p161, %s17, 1
        %p163 = scmp.lt.s32.totalorder %s18, 0
        %s164 = scalar_select %p163, %s18, 0
        %s165 = sadd.s32 %s164, %s162
        %s166 = smul.addr %s165, 8
        %s167 = scalar_lea.vmem %s0, %s166
      $region24: #{lfe_forward.2} parent=19 // pred_fallthru
        _
    $region20: #{lfe_forward.2} parent=5 // pred_fallthru
      _
    %p168 = scmp.le.s32.totalorder 1, %s10
    %p169 = scmp.lt.s32.totalorder %s10, 3
    %p170 = pnand %p168, %p169
    %p171 = pneg %p170
    // Predicated region
    $region25: #{lfe_forward.2} parent=5 // pred_check
      _
    $region26: #{lfe_forward.2} parent=5 // pred_check_branch
      %173 = sbr.rel (%p170) target = $region28
    $region27: #{lfe_forward.2} parent=5 // pred_region
      %s174 = ssub.s32 %s10, 1
      %p175 = scmp.lt.s32.totalorder %s19, 1
      %s176 = scalar_select %p175, %s19, 1
      %p177 = scmp.lt.s32.totalorder %s20, 0
      %s178 = scalar_select %p177, %s20, 0
      %s179 = sadd.s32 %s178, %s176
      %s180 = smul.addr %s179, 8
      %s181 = scalar_lea.vmem %s0, %s180
      %p182 = pneg %p50
      %p183 = pneg %p47
      %p184 = scmp.lt.s32.totalorder %s19, 1
      %s185 = scalar_select %p184, %s19, 1
      %s186 = smul.addr %s185, 4
      %s187 = scalar_lea.vmem %s1, %s186
      %p188 = pneg %p76
      %p189 = pneg %p73
      %p190 = pneg %p104
      %p191 = pneg %p101
      %p192 = scmp.lt.s32.totalorder %s19, 1
      %s193 = scalar_select %p192, %s19, 1
      %p194 = scmp.lt.s32.totalorder %s20, 0
      %s195 = scalar_select %p194, %s20, 0
      %s196 = sadd.s32 %s195, %s193
      %s197 = smul.addr %s196, 8
      %s198 = scalar_lea.vmem %s2, %s197
      %p199 = pneg %p132
      %p200 = pneg %p129
      %p201 = scmp.lt.s32.totalorder %s19, 1
      %s202 = scalar_select %p201, %s19, 1
      %p203 = scmp.lt.s32.totalorder %s20, 0
      %s204 = scalar_select %p203, %s20, 0
      %s205 = sadd.s32 %s204, %s202
      %s206 = smul.addr %s205, 8
      %s207 = scalar_lea.vmem %s3, %s206
      %p208 = scmp.lt.s32.totalorder %s19, 1
      %s209 = scalar_select %p208, %s19, 1
      %p210 = scmp.lt.s32.totalorder %s20, 0
      %s211 = scalar_select %p210, %s20, 0
      %s212 = sadd.s32 %s211, %s209
      %s213 = smul.addr %s212, 8
      %s214 = scalar_lea.vmem %s0, %s213
      %p215 = scmp.lt.s32.totalorder %s19, 1
      %s216 = scalar_select %p215, %s19, 1
      %s217 = smul.addr %s216, 4
      %s218 = scalar_lea.vmem %s1, %s217
      %p219 = scmp.lt.s32.totalorder %s19, 1
      %s220 = scalar_select %p219, %s19, 1
      %p221 = scmp.lt.s32.totalorder %s20, 0
      %s222 = scalar_select %p221, %s20, 0
      %s223 = sadd.s32 %s222, %s220
      %s224 = smul.addr %s223, 8
      %s225 = scalar_lea.vmem %s2, %s224
      %p226 = scmp.lt.s32.totalorder %s19, 1
      %s227 = scalar_select %p226, %s19, 1
      %p228 = scmp.lt.s32.totalorder %s20, 0
      %s229 = scalar_select %p228, %s20, 0
      %s230 = sadd.s32 %s229, %s227
      %s231 = smul.addr %s230, 8
      %s232 = scalar_lea.vmem %s3, %s231
      %v233 = vld [vmem:[%s214] sm:$0xff]
      %v234 = vld [vmem:[%s218] sm:$0x7]
      %236 = vset.pattern.permute.xlu0 0
      %237 = vperm.xlu0 %236, %v233
      %v238 = vpop.permute.xlu0 %237
      %v240 = vlaneseq
      %v241 = vshrl.u32 %v240, 7
      %v242 = vsub.s32 0, %v241
      %v243 = vrot.slane %v234, %v242
      %v244 = vsub.f32 %v238, %v243
      %v245 = vmul.f32 %v244, %v244
      %v246 = vadd.f32 %v245, 0.0
      %247 = vset.pattern.permute.xlu0 1
      %248 = vperm.xlu0 %247, %v233
      %v249 = vpop.permute.xlu0 %248
      %v251 = vlaneseq
      %v252 = vshrl.u32 %v251, 7
      %v253 = vsub.s32 1, %v252
      %v254 = vrot.slane %v234, %v253
      %v255 = vsub.f32 %v249, %v254
      %v256 = vmul.f32 %v255, %v255
      %v257 = vadd.f32 %v246, %v256
      %258 = vset.pattern.permute.xlu0 2
      %259 = vperm.xlu0 %258, %v233
      %v260 = vpop.permute.xlu0 %259
      %v262 = vlaneseq
      %v263 = vshrl.u32 %v262, 7
      %v264 = vsub.s32 2, %v263
      %v265 = vrot.slane %v234, %v264
      %v266 = vsub.f32 %v260, %v265
      %v267 = vmul.f32 %v266, %v266
      %v268 = vadd.f32 %v257, %v267
      %v269 = vlaneseq
      %v270 = vand.u32 %v269, 127
      %vm271 = vcmask 261120
      %v272 = vsel %vm271, %v268, inf
      %273 = vmin.index.xlane.f32.xlu0 %v272
      %v274 = vpop.xlane.xlu0 %273
      %vm275 = vcmask 7168
      %276 = vst.msk [vmem:[%s225] sm:$0xff] %vm275, %v274
      %vm277 = vcmp.eq.s32.totalorder %v270, %v274
      %v278 = vsel %vm277, 1, 0
      %v279 = vcvt.s32.f32 %v278
      %v280 = vadd.f32 %v279, 0.0
      %v281 = vsel %vm277, 1e+30, %v268
      %v282 = vsel %vm271, %v281, inf
      %283 = vmin.index.xlane.f32.xlu0 %v282
      %v284 = vpop.xlane.xlu0 %283
      %vm285 = vcmask 15368
      %286 = vst.msk [vmem:[%s225] sm:$0xff] %vm285, %v284
      %vm287 = vcmp.eq.s32.totalorder %v270, %v284
      %v288 = vsel %vm287, 1, 0
      %v289 = vcvt.s32.f32 %v288
      %v290 = vadd.f32 %v280, %v289
      %v291 = vsel %vm287, 1e+30, %v281
      %v292 = vsel %vm271, %v291, inf
      %293 = vmin.index.xlane.f32.xlu0 %v292
      %v294 = vpop.xlane.xlu0 %293
      %vm295 = vcmask 23568
      %296 = vst.msk [vmem:[%s225] sm:$0xff] %vm295, %v294
      %vm297 = vcmp.eq.s32.totalorder %v270, %v294
      %v298 = vsel %vm297, 1, 0
      %v299 = vcvt.s32.f32 %v298
      %v300 = vadd.f32 %v290, %v299
      %v301 = vsel %vm297, 1e+30, %v291
      %v302 = vsel %vm271, %v301, inf
      %303 = vmin.index.xlane.f32.xlu0 %v302
      %v304 = vpop.xlane.xlu0 %303
      %vm305 = vcmask 31768
      %306 = vst.msk [vmem:[%s225] sm:$0xff] %vm305, %v304
      %vm307 = vcmp.eq.s32.totalorder %v270, %v304
      %v308 = vsel %vm307, 1, 0
      %v309 = vcvt.s32.f32 %v308
      %v310 = vadd.f32 %v300, %v309
      %v311 = vmul.f32 %v234, %v234
      %v313 = vrot.slane %v234, 1
      %v315 = vmul.f32 %v234, %v313
      %v316 = vrot.slane %v234, 2
      %v318 = vmul.f32 %v234, %v316
      %v320 = vrot.slane %v311, 5
      %v323 = vrot.slane %v315, 4
      %v326 = vrot.slane %v318, 3
      %v328 = vrot.slane %v311, 3
      %v330 = vrot.slane %v315, 2
      %v332 = vrot.slane %v311, 2
      %vm333 = vcmask 1042432
      %v334 = vsel %vm333, %v234, %v320
      %vm335 = vcmask 1043456
      %v336 = vsel %vm335, %v334, %v323
      %vm337 = vcmask 1044480
      %v338 = vsel %vm337, %v336, %v326
      %vm339 = vcmask 1045504
      %v340 = vsel %vm339, %v338, %v328
      %vm341 = vcmask 1046528
      %v342 = vsel %vm341, %v340, %v330
      %v344 = vsel %vm271, %v310, 0
      %v347 = vsel %vm271, %v342, 0
      %v349 = vsel %vm271, %v332, 0
      %351 = vmatprep.subr.mxu0 0.0
      %352 = vmatpush1.xpose.msra.mxu0 0.0
      %353 = vmatprep.subr.mxu0 0.0
      %354 = vmatpush1.xpose.msra.mxu0 0.0
      %355 = vmatprep.subr.mxu0 0.0
      %356 = vmatpush1.xpose.msra.mxu0 0.0
      %357 = vmatprep.subr.mxu0 0.0
      %358 = vmatpush1.xpose.msra.mxu0 0.0
      %359 = vmatprep.subr.mxu0 0.0
      %360 = vmatpush1.xpose.msra.mxu0 0.0
      %361 = vmatprep.subr.mxu0 0.0
      %362 = vmatpush1.xpose.msra.mxu0 0.0
      %363 = vmatprep.subr.mxu0 0.0
      %364 = vmatpush1.xpose.msra.mxu0 0.0
      %365 = vmatprep.subr.mxu0 0.0
      %366 = vmatpush1.xpose.msra.mxu0 0.0
      %367 = vmatprep.subr.mxu0 0.0
      %368 = vmatpush1.xpose.msra.mxu0 0.0
      %369 = vmatprep.subr.mxu0 0.0
      %370 = vmatpush1.xpose.msra.mxu0 0.0
      %371 = vmatprep.subr.mxu0 0.0
      %372 = vmatpush1.xpose.msra.mxu0 0.0
      %373 = vmatprep.subr.mxu0 0.0
      %374 = vmatpush1.xpose.msra.mxu0 0.0
      %375 = vmatprep.subr.mxu0 0.0
      %376 = vmatpush1.xpose.msra.mxu0 0.0
      %377 = vmatprep.subr.mxu0 0.0
      %378 = vmatpush1.xpose.msra.mxu0 0.0
      %379 = vmatprep.subr.mxu0 0.0
      %380 = vmatpush1.xpose.msra.mxu0 %v349
      %381 = vmatprep.subr.mxu0 0.0
      %382 = vmatpush1.xpose.msra.mxu0 %v347
      %383 = vmatprep.subr.mxu0 0.0
      %384 = vmatpush2.xpose.msra.mxu0 0.0
      %385 = vmatprep.subr.mxu0 0.0
      %386 = vmatpush2.xpose.msra.mxu0 0.0
      %387 = vmatprep.subr.mxu0 0.0
      %388 = vmatpush2.xpose.msra.mxu0 0.0
      %389 = vmatprep.subr.mxu0 0.0
      %390 = vmatpush2.xpose.msra.mxu0 0.0
      %391 = vmatprep.subr.mxu0 0.0
      %392 = vmatpush2.xpose.msra.mxu0 0.0
      %393 = vmatprep.subr.mxu0 0.0
      %394 = vmatpush2.xpose.msra.mxu0 0.0
      %395 = vmatprep.subr.mxu0 0.0
      %396 = vmatpush2.xpose.msra.mxu0 0.0
      %397 = vmatprep.subr.mxu0 0.0
      %398 = vmatpush2.xpose.msra.mxu0 0.0
      %399 = vmatprep.subr.mxu0 0.0
      %400 = vmatpush2.xpose.msra.mxu0 0.0
      %401 = vmatprep.subr.mxu0 0.0
      %402 = vmatpush2.xpose.msra.mxu0 0.0
      %403 = vmatprep.subr.mxu0 0.0
      %404 = vmatpush2.xpose.msra.mxu0 0.0
      %405 = vmatprep.subr.mxu0 0.0
      %406 = vmatpush2.xpose.msra.mxu0 0.0
      %407 = vmatprep.subr.mxu0 0.0
      %408 = vmatpush2.xpose.msra.mxu0 0.0
      %409 = vmatprep.subr.mxu0 0.0
      %410 = vmatpush2.xpose.msra.mxu0 0.0
      %411 = vmatprep.subr.mxu0 0.0
      %412 = vmatpush2.xpose.msra.mxu0 0.0
      %413 = vmatprep.subr.mxu0 0.0
      %414 = vmatpush2.xpose.msra.mxu0 0.0
      %415 = vmatprep.mubr.f32.mxu0 0.0
      %416 = vmatmul.mubr.f32.gmra.mxu0 %v344
      %v417 = vpop.f32.mrf.mxu0
      %v418 = vadd.f32 0.0, %v417
      %v419 = vpop.f32.mrf.mxu0
      %420 = vdwg.mxu0
      %v421 = vmul.f32 %v418, 0.25
      %v422 = vmul.f32 %v421, %v421
      %424 = vrot.lane.b32.xlu0 %v422, 3
      %v425 = vpop.permute.xlu0 %424
      %v427 = vsub.f32 %v421, %v425
      %429 = vrot.lane.b32.xlu0 %v421, 127
      %v430 = vpop.permute.xlu0 %429
      %v432 = vmul.f32 %v421, %v430
      %434 = vrot.lane.b32.xlu0 %v432, 4
      %v435 = vpop.permute.xlu0 %434
      %v437 = vsub.f32 %v421, %v435
      %438 = vrot.lane.b32.xlu0 %v421, 126
      %v439 = vpop.permute.xlu0 %438
      %v441 = vmul.f32 %v421, %v439
      %443 = vrot.lane.b32.xlu0 %v441, 5
      %v444 = vpop.permute.xlu0 %443
      %v446 = vsub.f32 %v421, %v444
      %447 = vrot.lane.b32.xlu0 %v422, 5
      %v448 = vpop.permute.xlu0 %447
      %v450 = vsub.f32 %v421, %v448
      %451 = vrot.lane.b32.xlu0 %v432, 6
      %v452 = vpop.permute.xlu0 %451
      %v454 = vsub.f32 %v421, %v452
      %455 = vrot.lane.b32.xlu0 %v422, 6
      %v456 = vpop.permute.xlu0 %455
      %v458 = vsub.f32 %v421, %v456
      %460 = vrot.lane.b32.xlu0 %v427, 125
      %v461 = vpop.permute.xlu0 %460
      %464 = vrot.lane.b32.xlu0 %v437, 125
      %v465 = vpop.permute.xlu0 %464
      %468 = vrot.lane.b32.xlu0 %v446, 125
      %v469 = vpop.permute.xlu0 %468
      %471 = vrot.lane.b32.xlu0 %v437, 127
      %v472 = vpop.permute.xlu0 %471
      %475 = vrot.lane.b32.xlu0 %v450, 126
      %v476 = vpop.permute.xlu0 %475
      %479 = vrot.lane.b32.xlu0 %v454, 126
      %v480 = vpop.permute.xlu0 %479
      %482 = vrot.lane.b32.xlu0 %v446, 1
      %v483 = vpop.permute.xlu0 %482
      %v485 = vsel %vm275, %v461, %v465
      %vm486 = vcmask 15360
      %v487 = vsel %vm486, %v485, %v469
      %vm488 = vcmask 23552
      %v489 = vsel %vm488, %v487, %v472
      %vm490 = vcmask 31744
      %v491 = vsel %vm490, %v489, %v476
      %vm492 = vcmask 39936
      %v493 = vsel %vm492, %v491, %v480
      %vm494 = vcmask 48128
      %v495 = vsel %vm494, %v493, %v483
      %vm496 = vcmask 56320
      %v497 = vsel %vm496, %v495, %v454
      %vm498 = vcmask 64512
      %v499 = vsel %vm498, %v497, %v458
      %vm500 = vcmask 72704
      %501 = vst.msk [vmem:[%s232] sm:$0xff] %vm500, %v499
      %p502 = scmp.lt.s32.totalorder %s19, 1
      %s503 = scalar_select %p502, %s19, 1
      %p504 = scmp.lt.s32.totalorder %s20, 0
      %s505 = scalar_select %p504, %s20, 0
      %s506 = sadd.s32 %s505, %s503
      %s507 = smul.addr %s506, 8
      %s508 = scalar_lea.vmem %s2, %s507
      %p509 = scmp.lt.s32.totalorder %s19, 1
      %s510 = scalar_select %p509, %s19, 1
      %p511 = scmp.lt.s32.totalorder %s20, 0
      %s512 = scalar_select %p511, %s20, 0
      %s513 = sadd.s32 %s512, %s510
      %s514 = smul.addr %s513, 8
      %s515 = scalar_lea.vmem %s3, %s514
      // Predicated region
      $region29: #{lfe_forward.2} parent=27 // pred_check
        %p516 = pneg %p101
      $region30: #{lfe_forward.2} parent=27 // pred_check_branch
        %518 = sbr.rel (%p516) target = $region32
      $region31: #{lfe_forward.2} parent=27 // pred_region
        _
      $region32: #{lfe_forward.2} parent=27 // pred_fallthru
        _
      // Predicated region
      $region33: #{lfe_forward.2} parent=27 // pred_check
        %p519 = pneg %p129
      $region34: #{lfe_forward.2} parent=27 // pred_check_branch
        %521 = sbr.rel (%p519) target = $region36
      $region35: #{lfe_forward.2} parent=27 // pred_region
        _
      $region36: #{lfe_forward.2} parent=27 // pred_fallthru
        _
    $region28: #{lfe_forward.2} parent=5 // pred_fallthru
      _
    %p522 = scmp.le.s32.totalorder 2, %s10
    // Predicated region
    $region37: #{lfe_forward.2} parent=5 // pred_check
      %p523 = pneg %p522
    $region38: #{lfe_forward.2} parent=5 // pred_check_branch
      %525 = sbr.rel (%p523) target = $region40
    $region39: #{lfe_forward.2} parent=5 // pred_region
      %s526 = ssub.s32 %s10, 2
      // Predicated region
      $region41: #{lfe_forward.2} parent=39 // pred_check
        %p527 = pneg %p107
      $region42: #{lfe_forward.2} parent=39 // pred_check_branch
        %529 = sbr.rel (%p527) target = $region44
      $region43: #{lfe_forward.2} parent=39 // pred_region
        %p530 = scmp.lt.s32.totalorder %s21, 1
        %s531 = scalar_select %p530, %s21, 1
        %p532 = scmp.lt.s32.totalorder %s22, 0
        %s533 = scalar_select %p532, %s22, 0
        %s534 = sadd.s32 %s533, %s531
        %s535 = smul.addr %s534, 8
        %s536 = scalar_lea.vmem %s2, %s535
      $region44: #{lfe_forward.2} parent=39 // pred_fallthru
        _
      // Predicated region
      $region45: #{lfe_forward.2} parent=39 // pred_check
        %p537 = pneg %p135
      $region46: #{lfe_forward.2} parent=39 // pred_check_branch
        %539 = sbr.rel (%p537) target = $region48
      $region47: #{lfe_forward.2} parent=39 // pred_region
        %p540 = scmp.lt.s32.totalorder %s21, 1
        %s541 = scalar_select %p540, %s21, 1
        %p542 = scmp.lt.s32.totalorder %s22, 0
        %s543 = scalar_select %p542, %s22, 0
        %s544 = sadd.s32 %s543, %s541
        %s545 = smul.addr %s544, 8
        %s546 = scalar_lea.vmem %s3, %s545
      $region48: #{lfe_forward.2} parent=39 // pred_fallthru
        _
    $region40: #{lfe_forward.2} parent=5 // pred_fallthru
      _
  $region6: #{lfe_forward.2} parent=0 // loop_footer
    %s14 = sadd.s32 1, %s10
  $region7: #{lfe_forward.2} parent=0 // loop_footer_branch
    %9 = sbr.rel target = $region3
  $region8: #{lfe_forward.2} parent=0 // loop_exit
    _

// kernel: lfe_forward.3
$region0: #{lfe_forward.3}
  #allocation0 [shape = 'u32[]', space=smem, size = 0x4, offset = 0x4, fixed_abs, tag = 'smem constant byte address 0x4 - core index']
  #allocation1 [shape = 'u32[144,128]{1,0:T(1,128)}', space=vmem, size = 0x12000, scoped, tag = 'internal scratch']
  #allocation2 [shape = 'f32[8,4]{1,0:T(8,128)}', space=vmem, size = 0x1000, scoped, tag = 'scratch operand']
  #allocation3 [shape = 's32[1]{0}', space=sflag, size = 0x4, scoped, tag = 'scoped memory for lfe_forward.3']
  #allocation4 [shape = 'u8[512]{0}', space=smem, size = 0x200, scoped, tag = 'prefetched SMEM operand 0']
  %s0 = inlined_call_operand.vmem [shape: s32[64], index: 0, kind: input, shape index: {}]
  %s1 = inlined_call_operand.vmem [shape: f32[2,32,4], index: 1, kind: input, shape index: {}]
  %s2 = inlined_call_operand.vmem [shape: f32[2,8,9], index: 2, kind: input, shape index: {}]
  %s3 = inlined_call_operand.vmem [shape: f32[9,16], index: 3, kind: input, shape index: {}]
  %s4 = inlined_call_operand.vmem [shape: f32[1,16], index: 4, kind: input, shape index: {}]
  %s5 = inlined_call_operand.vmem [shape: f32[4,32], index: 5, kind: input, shape index: {}]
  %s6 = inlined_call_operand.vmem [shape: f32[16,32], index: 6, kind: input, shape index: {}]
  %s7 = inlined_call_operand.vmem [shape: f32[1,32], index: 7, kind: input, shape index: {}]
  %s8 = inlined_call_operand.vmem [shape: f32[32,32], index: 8, kind: input, shape index: {}]
  %s9 = inlined_call_operand.vmem [shape: f32[32,1], index: 9, kind: input, shape index: {}]
  %s10 = inlined_call_operand.vmem [shape: f32[2,32,8], index: 10, kind: output, shape index: {}]
  %s11 = sld [smem:[#allocation0]]
  $region69: #{lfe_forward.3} parent=0
    _
  %s13 = ssub.s32 1, %s11
  %s14 = scalar_select 0, %s13, %s11
  %s15 = sshll.u32 %s0, 4
  %s16 = int_to_ptr.vmem [resolvable:$true] %s15
  %18 = dma.vmem_to_smem %s16, 16, [#allocation4], [#allocation3]
  %19 = dma.done [#allocation3], 16
  %20 = sfence
  loop: start=0, step=1, limit=4
  $region2: #{lfe_forward.3} parent=0 // loop_pre_header
    _
  $region3: #{lfe_forward.3} parent=0 // loop_header
    %s22 = sphi 0, %s26
    %p23 = scmp.ge.s32.totalorder %s22, 4
    %s29 = sphi 0, %s41
    %s30 = sphi 0, %s37
    %s31 = sphi 0, %s29
    %s32 = sphi 0, %s30
    %s33 = sphi 0, %s31
    %s34 = sphi 0, %s32
    %s44 = sphi 0, %s46
    %s47 = sphi 0, %s44
    %s48 = sphi 0, %s47
    %s64 = sphi 0, %s48
    %s72 = sphi 0, %s74
    %s75 = sphi 0, %s72
    %s76 = sphi 0, %s75
    %s92 = sphi 0, %s76
    %s96 = sphi 0, %s96
    %s98 = sphi 0, %s96
    %s99 = sphi 0, %s98
    %s113 = sphi 0, %s99
    %s117 = sphi 0, %s117
    %s119 = sphi 0, %s117
    %s120 = sphi 0, %s119
    %s134 = sphi 0, %s120
    %s138 = sphi 0, %s138
    %s140 = sphi 0, %s138
    %s141 = sphi 0, %s140
    %s155 = sphi 0, %s141
    %s159 = sphi 0, %s159
    %s161 = sphi 0, %s159
    %s162 = sphi 0, %s161
    %s176 = sphi 0, %s162
    %s180 = sphi 0, %s180
    %s182 = sphi 0, %s180
    %s183 = sphi 0, %s182
    %s197 = sphi 0, %s183
    %s201 = sphi 0, %s201
    %s203 = sphi 0, %s201
    %s204 = sphi 0, %s203
    %s218 = sphi 0, %s204
    %s222 = sphi 0, %s222
    %s224 = sphi 0, %s222
    %s225 = sphi 0, %s224
    %s239 = sphi 0, %s225
    %s247 = sphi 0, %s249
    %s250 = sphi 0, %s247
    %s251 = sphi 0, %s250
    %s267 = sphi 0, %s251
  $region4: #{lfe_forward.3} parent=0 // loop_header_branch
    %25 = sbr.rel (%p23) target = $region8
  $region5: #{lfe_forward.3} parent=0 // loop_body
    %s27 = ssub.s32 %s22, 1
    %s28 = ssub.s32 %s22, 2
    %s35 = sadd.s32 1, %s30
    %p36 = scmp.ge.s32.totalorder %s35, 1
    %s37 = scalar_select %p36, 0, %s35
    %s38 = sadd.s32 1, %s29
    %s39 = scalar_select %p36, %s38, %s29
    %p40 = scmp.ge.s32.totalorder %s39, 2
    %s41 = scalar_select %p40, 0, %s39
    %s42 = ssub.s32 %s29, %s41
    %p43 = scmp.eq.s32.totalorder %s42, 0
    %s45 = sadd.s32 %s44, 1
    %s46 = scalar_select %p43, %s44, %s45
    %p49 = pneg %p43
    %p50 = scmp.eq.s32.totalorder %s22, 1
    %p51 = por %p49, %p50
    %p52 = scmp.ne.s32.totalorder %s44, %s47
    %p53 = scmp.eq.s32.totalorder %s22, 0
    %p54 = por %p52, %p53
    %p55 = scmp.ne.s32.totalorder %s44, %s47
    %p56 = scmp.eq.s32.totalorder %s27, 1
    %p57 = por %p55, %p56
    %p58 = scmp.ne.s32.totalorder %s47, %s48
    %p59 = scmp.eq.s32.totalorder %s27, 0
    %p60 = por %p58, %p59
    %p61 = scmp.ne.s32.totalorder %s47, %s48
    %p62 = scmp.eq.s32.totalorder %s28, 1
    %p63 = por %p61, %p62
    %p65 = scmp.ne.s32.totalorder %s48, %s64
    %p66 = scmp.eq.s32.totalorder %s28, 0
    %p67 = por %p65, %p66
    %s68 = ssub.s32 %s29, %s41
    %s69 = ssub.s32 %s30, %s37
    %s70 = sor.u32 %s68, %s69
    %p71 = scmp.eq.s32.totalorder %s70, 0
    %s73 = sadd.s32 %s72, 1
    %s74 = scalar_select %p71, %s72, %s73
    %p77 = pneg %p71
    %p78 = scmp.eq.s32.totalorder %s22, 1
    %p79 = por %p77, %p78
    %p80 = scmp.ne.s32.totalorder %s72, %s75
    %p81 = scmp.eq.s32.totalorder %s22, 0
    %p82 = por %p80, %p81
    %p83 = scmp.ne.s32.totalorder %s72, %s75
    %p84 = scmp.eq.s32.totalorder %s27, 1
    %p85 = por %p83, %p84
    %p86 = scmp.ne.s32.totalorder %s75, %s76
    %p87 = scmp.eq.s32.totalorder %s27, 0
    %p88 = por %p86, %p87
    %p89 = scmp.ne.s32.totalorder %s75, %s76
    %p90 = scmp.eq.s32.totalorder %s28, 1
    %p91 = por %p89, %p90
    %p93 = scmp.ne.s32.totalorder %s76, %s92
    %p94 = scmp.eq.s32.totalorder %s28, 0
    %p95 = por %p93, %p94
    %s97 = sadd.s32 %s96, 1
    %p100 = scmp.eq.s32.totalorder %s22, 1
    %p101 = scmp.ne.s32.totalorder %s96, %s98
    %p102 = scmp.eq.s32.totalorder %s22, 0
    %p103 = por %p101, %p102
    %p104 = scmp.ne.s32.totalorder %s96, %s98
    %p105 = scmp.eq.s32.totalorder %s27, 1
    %p106 = por %p104, %p105
    %p107 = scmp.ne.s32.totalorder %s98, %s99
    %p108 = scmp.eq.s32.totalorder %s27, 0
    %p109 = por %p107, %p108
    %p110 = scmp.ne.s32.totalorder %s98, %s99
    %p111 = scmp.eq.s32.totalorder %s28, 1
    %p112 = por %p110, %p111
    %p114 = scmp.ne.s32.totalorder %s99, %s113
    %p115 = scmp.eq.s32.totalorder %s28, 0
    %p116 = por %p114, %p115
    %s118 = sadd.s32 %s117, 1
    %p121 = scmp.eq.s32.totalorder %s22, 1
    %p122 = scmp.ne.s32.totalorder %s117, %s119
    %p123 = scmp.eq.s32.totalorder %s22, 0
    %p124 = por %p122, %p123
    %p125 = scmp.ne.s32.totalorder %s117, %s119
    %p126 = scmp.eq.s32.totalorder %s27, 1
    %p127 = por %p125, %p126
    %p128 = scmp.ne.s32.totalorder %s119, %s120
    %p129 = scmp.eq.s32.totalorder %s27, 0
    %p130 = por %p128, %p129
    %p131 = scmp.ne.s32.totalorder %s119, %s120
    %p132 = scmp.eq.s32.totalorder %s28, 1
    %p133 = por %p131, %p132
    %p135 = scmp.ne.s32.totalorder %s120, %s134
    %p136 = scmp.eq.s32.totalorder %s28, 0
    %p137 = por %p135, %p136
    %s139 = sadd.s32 %s138, 1
    %p142 = scmp.eq.s32.totalorder %s22, 1
    %p143 = scmp.ne.s32.totalorder %s138, %s140
    %p144 = scmp.eq.s32.totalorder %s22, 0
    %p145 = por %p143, %p144
    %p146 = scmp.ne.s32.totalorder %s138, %s140
    %p147 = scmp.eq.s32.totalorder %s27, 1
    %p148 = por %p146, %p147
    %p149 = scmp.ne.s32.totalorder %s140, %s141
    %p150 = scmp.eq.s32.totalorder %s27, 0
    %p151 = por %p149, %p150
    %p152 = scmp.ne.s32.totalorder %s140, %s141
    %p153 = scmp.eq.s32.totalorder %s28, 1
    %p154 = por %p152, %p153
    %p156 = scmp.ne.s32.totalorder %s141, %s155
    %p157 = scmp.eq.s32.totalorder %s28, 0
    %p158 = por %p156, %p157
    %s160 = sadd.s32 %s159, 1
    %p163 = scmp.eq.s32.totalorder %s22, 1
    %p164 = scmp.ne.s32.totalorder %s159, %s161
    %p165 = scmp.eq.s32.totalorder %s22, 0
    %p166 = por %p164, %p165
    %p167 = scmp.ne.s32.totalorder %s159, %s161
    %p168 = scmp.eq.s32.totalorder %s27, 1
    %p169 = por %p167, %p168
    %p170 = scmp.ne.s32.totalorder %s161, %s162
    %p171 = scmp.eq.s32.totalorder %s27, 0
    %p172 = por %p170, %p171
    %p173 = scmp.ne.s32.totalorder %s161, %s162
    %p174 = scmp.eq.s32.totalorder %s28, 1
    %p175 = por %p173, %p174
    %p177 = scmp.ne.s32.totalorder %s162, %s176
    %p178 = scmp.eq.s32.totalorder %s28, 0
    %p179 = por %p177, %p178
    %s181 = sadd.s32 %s180, 1
    %p184 = scmp.eq.s32.totalorder %s22, 1
    %p185 = scmp.ne.s32.totalorder %s180, %s182
    %p186 = scmp.eq.s32.totalorder %s22, 0
    %p187 = por %p185, %p186
    %p188 = scmp.ne.s32.totalorder %s180, %s182
    %p189 = scmp.eq.s32.totalorder %s27, 1
    %p190 = por %p188, %p189
    %p191 = scmp.ne.s32.totalorder %s182, %s183
    %p192 = scmp.eq.s32.totalorder %s27, 0
    %p193 = por %p191, %p192
    %p194 = scmp.ne.s32.totalorder %s182, %s183
    %p195 = scmp.eq.s32.totalorder %s28, 1
    %p196 = por %p194, %p195
    %p198 = scmp.ne.s32.totalorder %s183, %s197
    %p199 = scmp.eq.s32.totalorder %s28, 0
    %p200 = por %p198, %p199
    %s202 = sadd.s32 %s201, 1
    %p205 = scmp.eq.s32.totalorder %s22, 1
    %p206 = scmp.ne.s32.totalorder %s201, %s203
    %p207 = scmp.eq.s32.totalorder %s22, 0
    %p208 = por %p206, %p207
    %p209 = scmp.ne.s32.totalorder %s201, %s203
    %p210 = scmp.eq.s32.totalorder %s27, 1
    %p211 = por %p209, %p210
    %p212 = scmp.ne.s32.totalorder %s203, %s204
    %p213 = scmp.eq.s32.totalorder %s27, 0
    %p214 = por %p212, %p213
    %p215 = scmp.ne.s32.totalorder %s203, %s204
    %p216 = scmp.eq.s32.totalorder %s28, 1
    %p217 = por %p215, %p216
    %p219 = scmp.ne.s32.totalorder %s204, %s218
    %p220 = scmp.eq.s32.totalorder %s28, 0
    %p221 = por %p219, %p220
    %s223 = sadd.s32 %s222, 1
    %p226 = scmp.eq.s32.totalorder %s22, 1
    %p227 = scmp.ne.s32.totalorder %s222, %s224
    %p228 = scmp.eq.s32.totalorder %s22, 0
    %p229 = por %p227, %p228
    %p230 = scmp.ne.s32.totalorder %s222, %s224
    %p231 = scmp.eq.s32.totalorder %s27, 1
    %p232 = por %p230, %p231
    %p233 = scmp.ne.s32.totalorder %s224, %s225
    %p234 = scmp.eq.s32.totalorder %s27, 0
    %p235 = por %p233, %p234
    %p236 = scmp.ne.s32.totalorder %s224, %s225
    %p237 = scmp.eq.s32.totalorder %s28, 1
    %p238 = por %p236, %p237
    %p240 = scmp.ne.s32.totalorder %s225, %s239
    %p241 = scmp.eq.s32.totalorder %s28, 0
    %p242 = por %p240, %p241
    %s243 = ssub.s32 %s29, %s41
    %s244 = ssub.s32 %s30, %s37
    %s245 = sor.u32 %s243, %s244
    %p246 = scmp.eq.s32.totalorder %s245, 0
    %s248 = sadd.s32 %s247, 1
    %s249 = scalar_select %p246, %s247, %s248
    %p252 = pneg %p246
    %p253 = scmp.eq.s32.totalorder %s22, 1
    %p254 = por %p252, %p253
    %p255 = scmp.ne.s32.totalorder %s247, %s250
    %p256 = scmp.eq.s32.totalorder %s22, 0
    %p257 = por %p255, %p256
    %p258 = scmp.ne.s32.totalorder %s247, %s250
    %p259 = scmp.eq.s32.totalorder %s27, 1
    %p260 = por %p258, %p259
    %p261 = scmp.ne.s32.totalorder %s250, %s251
    %p262 = scmp.eq.s32.totalorder %s27, 0
    %p263 = por %p261, %p262
    %p264 = scmp.ne.s32.totalorder %s250, %s251
    %p265 = scmp.eq.s32.totalorder %s28, 1
    %p266 = por %p264, %p265
    %p268 = scmp.ne.s32.totalorder %s251, %s267
    %p269 = scmp.eq.s32.totalorder %s28, 0
    %p270 = por %p268, %p269
    %p271 = scmp.le.s32.totalorder 1, %s22
    %p272 = scmp.lt.s32.totalorder %s22, 3
    %p273 = pnand %p271, %p272
    %p274 = pneg %p273
    // Predicated region
    $region9: #{lfe_forward.3} parent=5 // pred_check
      _
    $region10: #{lfe_forward.3} parent=5 // pred_check_branch
      %276 = sbr.rel (%p273) target = $region12
    $region11: #{lfe_forward.3} parent=5 // pred_region
      %s277 = ssub.s32 %s22, 1
      // Predicated region
      $region13: #{lfe_forward.3} parent=11 // pred_check
        %p278 = pneg %p60
      $region14: #{lfe_forward.3} parent=11 // pred_check_branch
        %280 = sbr.rel (%p278) target = $region16
      $region15: #{lfe_forward.3} parent=11 // pred_region
        %p281 = scmp.lt.s32.totalorder %s31, 1
        %s282 = scalar_select %p281, %s31, 1
        %s283 = smul.addr %s282, 4
        %s284 = smul.addr %s283, 8
        %s285 = scalar_lea.vmem %s1, %s284
      $region16: #{lfe_forward.3} parent=11 // pred_fallthru
        _
      // Predicated region
      $region17: #{lfe_forward.3} parent=11 // pred_check
        %p286 = pneg %p109
      $region18: #{lfe_forward.3} parent=11 // pred_check_branch
        %288 = sbr.rel (%p286) target = $region20
      $region19: #{lfe_forward.3} parent=11 // pred_region
        _
      $region20: #{lfe_forward.3} parent=11 // pred_fallthru
        _
      // Predicated region
      $region21: #{lfe_forward.3} parent=11 // pred_check
        %p289 = pneg %p130
      $region22: #{lfe_forward.3} parent=11 // pred_check_branch
        %291 = sbr.rel (%p289) target = $region24
      $region23: #{lfe_forward.3} parent=11 // pred_region
        _
      $region24: #{lfe_forward.3} parent=11 // pred_fallthru
        _
      // Predicated region
      $region25: #{lfe_forward.3} parent=11 // pred_check
        %p292 = pneg %p151
      $region26: #{lfe_forward.3} parent=11 // pred_check_branch
        %294 = sbr.rel (%p292) target = $region28
      $region27: #{lfe_forward.3} parent=11 // pred_region
        _
      $region28: #{lfe_forward.3} parent=11 // pred_fallthru
        _
      // Predicated region
      $region29: #{lfe_forward.3} parent=11 // pred_check
        %p295 = pneg %p172
      $region30: #{lfe_forward.3} parent=11 // pred_check_branch
        %297 = sbr.rel (%p295) target = $region32
      $region31: #{lfe_forward.3} parent=11 // pred_region
        _
      $region32: #{lfe_forward.3} parent=11 // pred_fallthru
        _
      // Predicated region
      $region33: #{lfe_forward.3} parent=11 // pred_check
        %p298 = pneg %p193
      $region34: #{lfe_forward.3} parent=11 // pred_check_branch
        %300 = sbr.rel (%p298) target = $region36
      $region35: #{lfe_forward.3} parent=11 // pred_region
        _
      $region36: #{lfe_forward.3} parent=11 // pred_fallthru
        _
      // Predicated region
      $region37: #{lfe_forward.3} parent=11 // pred_check
        %p301 = pneg %p214
      $region38: #{lfe_forward.3} parent=11 // pred_check_branch
        %303 = sbr.rel (%p301) target = $region40
      $region39: #{lfe_forward.3} parent=11 // pred_region
        _
      $region40: #{lfe_forward.3} parent=11 // pred_fallthru
        _
      // Predicated region
      $region41: #{lfe_forward.3} parent=11 // pred_check
        %p304 = pneg %p235
      $region42: #{lfe_forward.3} parent=11 // pred_check_branch
        %306 = sbr.rel (%p304) target = $region44
      $region43: #{lfe_forward.3} parent=11 // pred_region
        _
      $region44: #{lfe_forward.3} parent=11 // pred_fallthru
        _
    $region12: #{lfe_forward.3} parent=5 // pred_fallthru
      _
    %p307 = scmp.lt.s32.totalorder %s22, 2
    // Predicated region
    $region45: #{lfe_forward.3} parent=5 // pred_check
      %p308 = pneg %p307
    $region46: #{lfe_forward.3} parent=5 // pred_check_branch
      %310 = sbr.rel (%p308) target = $region48
    $region47: #{lfe_forward.3} parent=5 // pred_region
      // Predicated region
      $region49: #{lfe_forward.3} parent=47 // pred_check
        %p311 = pneg %p82
      $region50: #{lfe_forward.3} parent=47 // pred_check_branch
        %313 = sbr.rel (%p311) target = $region52
      $region51: #{lfe_forward.3} parent=47 // pred_region
        %p314 = scmp.lt.s32.totalorder %s29, 1
        %s315 = scalar_select %p314, %s29, 1
        %p316 = scmp.lt.s32.totalorder %s30, 0
        %s317 = scalar_select %p316, %s30, 0
        %s318 = sadd.s32 %s317, %s315
        %s319 = smul.addr %s318, 8
        %s320 = scalar_lea.vmem %s2, %s319
      $region52: #{lfe_forward.3} parent=47 // pred_fallthru
        _
    $region48: #{lfe_forward.3} parent=5 // pred_fallthru
      _
    %p321 = scmp.le.s32.totalorder 1, %s22
    %p322 = scmp.lt.s32.totalorder %s22, 3
    %p323 = pnand %p321, %p322
    %p324 = pneg %p323
    // Predicated region
    $region53: #{lfe_forward.3} parent=5 // pred_check
      _
    $region54: #{lfe_forward.3} parent=5 // pred_check_branch
      %326 = sbr.rel (%p323) target = $region56
    $region55: #{lfe_forward.3} parent=5 // pred_region
      %s327 = ssub.s32 %s22, 1
      %p328 = scmp.lt.s32.totalorder %s31, 1
      %s329 = scalar_select %p328, %s31, 1
      %s330 = smul.addr %s329, 4
      %s331 = smul.addr %s330, 8
      %s332 = scalar_lea.vmem %s1, %s331
      %p333 = pneg %p60
      %p334 = pneg %p57
      %p335 = scmp.lt.s32.totalorder %s31, 1
      %s336 = scalar_select %p335, %s31, 1
      %p337 = scmp.lt.s32.totalorder %s32, 0
      %s338 = scalar_select %p337, %s32, 0
      %s339 = sadd.s32 %s338, %s336
      %s340 = smul.addr %s339, 8
      %s341 = scalar_lea.vmem %s2, %s340
      %p342 = pneg %p88
      %p343 = pneg %p85
      %p344 = pneg %p109
      %p345 = pneg %p106
      %p346 = pneg %p130
      %p347 = pneg %p127
      %p348 = pneg %p151
      %p349 = pneg %p148
      %p350 = pneg %p172
      %p351 = pneg %p169
      %p352 = pneg %p193
      %p353 = pneg %p190
      %p354 = pneg %p214
      %p355 = pneg %p211
      %p356 = pneg %p235
      %p357 = pneg %p232
      %p358 = pneg %p263
      %p359 = pneg %p260
      %p360 = scmp.lt.s32.totalorder %s31, 1
      %s361 = scalar_select %p360, %s31, 1
      %p362 = scmp.lt.s32.totalorder %s32, 0
      %s363 = scalar_select %p362, %s32, 0
      %s364 = smul.addr %s361, 4
      %s365 = sadd.s32 %s363, %s364
      %s366 = smul.addr %s365, 8
      %s367 = scalar_lea.vmem %s10, %s366
      %p368 = scmp.lt.s32.totalorder %s31, 1
      %s369 = scalar_select %p368, %s31, 1
      %s370 = smul.addr %s369, 4
      %s371 = smul.addr %s370, 8
      %s372 = scalar_lea.vmem %s1, %s371
      %p373 = scmp.lt.s32.totalorder %s31, 1
      %s374 = scalar_select %p373, %s31, 1
      %p375 = scmp.lt.s32.totalorder %s32, 0
      %s376 = scalar_select %p375, %s32, 0
      %s377 = sadd.s32 %s376, %s374
      %s378 = smul.addr %s377, 8
      %s379 = scalar_lea.vmem %s2, %s378
      %p380 = scmp.lt.s32.totalorder %s31, 1
      %s381 = scalar_select %p380, %s31, 1
      %p382 = scmp.lt.s32.totalorder %s32, 0
      %s383 = scalar_select %p382, %s32, 0
      %s384 = smul.addr %s381, 4
      %s385 = sadd.s32 %s383, %s384
      %s386 = smul.addr %s385, 8
      %s387 = scalar_lea.vmem %s10, %s386
      %s388 = smul.u32 %s31, 8
      %s389 = smul.u32 %s32, 8
      %s390 = sadd.s32 %s388, %s389
      %s391 = smul.u32 %s390, 4
      %s392 = sld [smem:[#allocation4 + %s391]]
      %s393 = scalar_lea.vmem %s372, %s392
      %v394 = vld [vmem:[%s393] sm:$0x1]
      %s395 = sadd.s32 %s391, 1
      %s396 = sld [smem:[#allocation4 + %s395]]
      %s397 = scalar_lea.vmem %s372, %s396
      %v398 = vld [vmem:[%s397] sm:$0x1]
      %v399 = vmax.f32 %v394, %v398
      %s400 = sadd.s32 %s391, 2
      %s401 = sld [smem:[#allocation4 + %s400]]
      %s402 = scalar_lea.vmem %s372, %s401
      %v403 = vld [vmem:[%s402] sm:$0x1]
      %v404 = vmax.f32 %v399, %v403
      %s405 = sadd.s32 %s391, 3
      %s406 = sld [smem:[#allocation4 + %s405]]
      %s407 = scalar_lea.vmem %s372, %s406
      %v408 = vld [vmem:[%s407] sm:$0x1]
      %v409 = vmax.f32 %v404, %v408
      %s410 = sadd.s32 %s391, 4
      %s411 = sld [smem:[#allocation4 + %s410]]
      %s412 = scalar_lea.vmem %s372, %s411
      %v413 = vld [vmem:[%s412] sm:$0x1]
      %s414 = sadd.s32 %s391, 5
      %s415 = sld [smem:[#allocation4 + %s414]]
      %s416 = scalar_lea.vmem %s372, %s415
      %v417 = vld [vmem:[%s416] sm:$0x1]
      %v418 = vmax.f32 %v413, %v417
      %s419 = sadd.s32 %s391, 6
      %s420 = sld [smem:[#allocation4 + %s419]]
      %s421 = scalar_lea.vmem %s372, %s420
      %v422 = vld [vmem:[%s421] sm:$0x1]
      %v423 = vmax.f32 %v418, %v422
      %s424 = sadd.s32 %s391, 7
      %s425 = sld [smem:[#allocation4 + %s424]]
      %s426 = scalar_lea.vmem %s372, %s425
      %v427 = vld [vmem:[%s426] sm:$0x1]
      %v428 = vmax.f32 %v423, %v427
      %s429 = sadd.s32 %s391, 8
      %s430 = sld [smem:[#allocation4 + %s429]]
      %s431 = scalar_lea.vmem %s372, %s430
      %v432 = vld [vmem:[%s431] sm:$0x1]
      %s433 = sadd.s32 %s391, 9
      %s434 = sld [smem:[#allocation4 + %s433]]
      %s435 = scalar_lea.vmem %s372, %s434
      %v436 = vld [vmem:[%s435] sm:$0x1]
      %v437 = vmax.f32 %v432, %v436
      %s438 = sadd.s32 %s391, 10
      %s439 = sld [smem:[#allocation4 + %s438]]
      %s440 = scalar_lea.vmem %s372, %s439
      %v441 = vld [vmem:[%s440] sm:$0x1]
      %v442 = vmax.f32 %v437, %v441
      %s443 = sadd.s32 %s391, 11
      %s444 = sld [smem:[#allocation4 + %s443]]
      %s445 = scalar_lea.vmem %s372, %s444
      %v446 = vld [vmem:[%s445] sm:$0x1]
      %v447 = vmax.f32 %v442, %v446
      %s448 = sadd.s32 %s391, 12
      %s449 = sld [smem:[#allocation4 + %s448]]
      %s450 = scalar_lea.vmem %s372, %s449
      %v451 = vld [vmem:[%s450] sm:$0x1]
      %s452 = sadd.s32 %s391, 13
      %s453 = sld [smem:[#allocation4 + %s452]]
      %s454 = scalar_lea.vmem %s372, %s453
      %v455 = vld [vmem:[%s454] sm:$0x1]
      %v456 = vmax.f32 %v451, %v455
      %s457 = sadd.s32 %s391, 14
      %s458 = sld [smem:[#allocation4 + %s457]]
      %s459 = scalar_lea.vmem %s372, %s458
      %v460 = vld [vmem:[%s459] sm:$0x1]
      %v461 = vmax.f32 %v456, %v460
      %s462 = sadd.s32 %s391, 15
      %s463 = sld [smem:[#allocation4 + %s462]]
      %s464 = scalar_lea.vmem %s372, %s463
      %v465 = vld [vmem:[%s464] sm:$0x1]
      %v466 = vmax.f32 %v461, %v465
      %s467 = sadd.s32 %s391, 16
      %s468 = sld [smem:[#allocation4 + %s467]]
      %s469 = scalar_lea.vmem %s372, %s468
      %v470 = vld [vmem:[%s469] sm:$0x1]
      %s471 = sadd.s32 %s391, 17
      %s472 = sld [smem:[#allocation4 + %s471]]
      %s473 = scalar_lea.vmem %s372, %s472
      %v474 = vld [vmem:[%s473] sm:$0x1]
      %v475 = vmax.f32 %v470, %v474
      %s476 = sadd.s32 %s391, 18
      %s477 = sld [smem:[#allocation4 + %s476]]
      %s478 = scalar_lea.vmem %s372, %s477
      %v479 = vld [vmem:[%s478] sm:$0x1]
      %v480 = vmax.f32 %v475, %v479
      %s481 = sadd.s32 %s391, 19
      %s482 = sld [smem:[#allocation4 + %s481]]
      %s483 = scalar_lea.vmem %s372, %s482
      %v484 = vld [vmem:[%s483] sm:$0x1]
      %v485 = vmax.f32 %v480, %v484
      %s486 = sadd.s32 %s391, 20
      %s487 = sld [smem:[#allocation4 + %s486]]
      %s488 = scalar_lea.vmem %s372, %s487
      %v489 = vld [vmem:[%s488] sm:$0x1]
      %s490 = sadd.s32 %s391, 21
      %s491 = sld [smem:[#allocation4 + %s490]]
      %s492 = scalar_lea.vmem %s372, %s491
      %v493 = vld [vmem:[%s492] sm:$0x1]
      %v494 = vmax.f32 %v489, %v493
      %s495 = sadd.s32 %s391, 22
      %s496 = sld [smem:[#allocation4 + %s495]]
      %s497 = scalar_lea.vmem %s372, %s496
      %v498 = vld [vmem:[%s497] sm:$0x1]
      %v499 = vmax.f32 %v494, %v498
      %s500 = sadd.s32 %s391, 23
      %s501 = sld [smem:[#allocation4 + %s500]]
      %s502 = scalar_lea.vmem %s372, %s501
      %v503 = vld [vmem:[%s502] sm:$0x1]
      %v504 = vmax.f32 %v499, %v503
      %s505 = sadd.s32 %s391, 24
      %s506 = sld [smem:[#allocation4 + %s505]]
      %s507 = scalar_lea.vmem %s372, %s506
      %v508 = vld [vmem:[%s507] sm:$0x1]
      %s509 = sadd.s32 %s391, 25
      %s510 = sld [smem:[#allocation4 + %s509]]
      %s511 = scalar_lea.vmem %s372, %s510
      %v512 = vld [vmem:[%s511] sm:$0x1]
      %v513 = vmax.f32 %v508, %v512
      %s514 = sadd.s32 %s391, 26
      %s515 = sld [smem:[#allocation4 + %s514]]
      %s516 = scalar_lea.vmem %s372, %s515
      %v517 = vld [vmem:[%s516] sm:$0x1]
      %v518 = vmax.f32 %v513, %v517
      %s519 = sadd.s32 %s391, 27
      %s520 = sld [smem:[#allocation4 + %s519]]
      %s521 = scalar_lea.vmem %s372, %s520
      %v522 = vld [vmem:[%s521] sm:$0x1]
      %v523 = vmax.f32 %v518, %v522
      %s524 = sadd.s32 %s391, 28
      %s525 = sld [smem:[#allocation4 + %s524]]
      %s526 = scalar_lea.vmem %s372, %s525
      %v527 = vld [vmem:[%s526] sm:$0x1]
      %s528 = sadd.s32 %s391, 29
      %s529 = sld [smem:[#allocation4 + %s528]]
      %s530 = scalar_lea.vmem %s372, %s529
      %v531 = vld [vmem:[%s530] sm:$0x1]
      %v532 = vmax.f32 %v527, %v531
      %s533 = sadd.s32 %s391, 30
      %s534 = sld [smem:[#allocation4 + %s533]]
      %s535 = scalar_lea.vmem %s372, %s534
      %v536 = vld [vmem:[%s535] sm:$0x1]
      %v537 = vmax.f32 %v532, %v536
      %s538 = sadd.s32 %s391, 31
      %s539 = sld [smem:[#allocation4 + %s538]]
      %s540 = scalar_lea.vmem %s372, %s539
      %v541 = vld [vmem:[%s540] sm:$0x1]
      %v542 = vmax.f32 %v537, %v541
      %v544 = vrot.slane %v428, 7
      %v547 = vrot.slane %v447, 6
      %v550 = vrot.slane %v466, 5
      %v553 = vrot.slane %v485, 4
      %v556 = vrot.slane %v504, 3
      %v559 = vrot.slane %v523, 2
      %v562 = vrot.slane %v542, 1
      %vm564 = vcmask 1040384
      %v565 = vsel %vm564, %v409, %v544
      %vm566 = vcmask 1041408
      %v567 = vsel %vm566, %v565, %v547
      %vm568 = vcmask 1042432
      %v569 = vsel %vm568, %v567, %v550
      %vm570 = vcmask 1043456
      %v571 = vsel %vm570, %v569, %v553
      %vm572 = vcmask 1044480
      %v573 = vsel %vm572, %v571, %v556
      %vm574 = vcmask 1045504
      %v575 = vsel %vm574, %v573, %v559
      %vm576 = vcmask 1046528
      %v577 = vsel %vm576, %v575, %v562
      %vm578 = vcmask 31744
      %579 = vst.msk [vmem:[#allocation2] sm:$0xff] %vm578, %v577
      %v580 = vld [vmem:[%s379] sm:$0xff]
      %v581 = vld [vmem:[%s3] sm:$0xff]
      %v582 = vld [vmem:[%s3 + $0x8] sm:$0x1]
      %v583 = vld [vmem:[%s4] sm:$0x1]
      %v585 = vlaneseq
      %v586 = vshrl.u32 %v585, 7
      %v587 = vsub.s32 0, %v586
      %v588 = vrot.slane %v583, %v587
      %vm590 = vcmask 72704
      %v592 = vsel %vm590, %v580, 0
      %v595 = vsel %vm564, %v582, 0
      %597 = vmatprep.subr.mxu0 0.0
      %598 = vmatpush1.msra.mxu0 0.0
      %599 = vmatprep.subr.mxu0 0.0
      %600 = vmatpush1.msra.mxu0 0.0
      %601 = vmatprep.subr.mxu0 0.0
      %602 = vmatpush1.msra.mxu0 0.0
      %603 = vmatprep.subr.mxu0 0.0
      %604 = vmatpush1.msra.mxu0 0.0
      %605 = vmatprep.subr.mxu0 0.0
      %606 = vmatpush1.msra.mxu0 0.0
      %607 = vmatprep.subr.mxu0 0.0
      %608 = vmatpush1.msra.mxu0 0.0
      %609 = vmatprep.subr.mxu0 0.0
      %610 = vmatpush1.msra.mxu0 0.0
      %611 = vmatprep.subr.mxu0 0.0
      %612 = vmatpush1.msra.mxu0 0.0
      %613 = vmatprep.subr.mxu0 0.0
      %614 = vmatpush1.msra.mxu0 0.0
      %615 = vmatprep.subr.mxu0 0.0
      %616 = vmatpush1.msra.mxu0 0.0
      %617 = vmatprep.subr.mxu0 0.0
      %618 = vmatpush1.msra.mxu0 0.0
      %619 = vmatprep.subr.mxu0 0.0
      %620 = vmatpush1.msra.mxu0 0.0
      %621 = vmatprep.subr.mxu0 0.0
      %622 = vmatpush1.msra.mxu0 0.0
      %623 = vmatprep.subr.mxu0 0.0
      %624 = vmatpush1.msra.mxu0 0.0
      %625 = vmatprep.subr.mxu0 0.0
      %626 = vmatpush1.msra.mxu0 %v595
      %627 = vmatprep.subr.mxu0 0.0
      %628 = vmatpush1.msra.mxu0 %v581
      %629 = vmatprep.subr.mxu0 0.0
      %630 = vmatpush2.msra.mxu0 0.0
      %631 = vmatprep.subr.mxu0 0.0
      %632 = vmatpush2.msra.mxu0 0.0
      %633 = vmatprep.subr.mxu0 0.0
      %634 = vmatpush2.msra.mxu0 0.0
      %635 = vmatprep.subr.mxu0 0.0
      %636 = vmatpush2.msra.mxu0 0.0
      %637 = vmatprep.subr.mxu0 0.0
      %638 = vmatpush2.msra.mxu0 0.0
      %639 = vmatprep.subr.mxu0 0.0
      %640 = vmatpush2.msra.mxu0 0.0
      %641 = vmatprep.subr.mxu0 0.0
      %642 = vmatpush2.msra.mxu0 0.0
      %643 = vmatprep.subr.mxu0 0.0
      %644 = vmatpush2.msra.mxu0 0.0
      %645 = vmatprep.subr.mxu0 0.0
      %646 = vmatpush2.msra.mxu0 0.0
      %647 = vmatprep.subr.mxu0 0.0
      %648 = vmatpush2.msra.mxu0 0.0
      %649 = vmatprep.subr.mxu0 0.0
      %650 = vmatpush2.msra.mxu0 0.0
      %651 = vmatprep.subr.mxu0 0.0
      %652 = vmatpush2.msra.mxu0 0.0
      %653 = vmatprep.subr.mxu0 0.0
      %654 = vmatpush2.msra.mxu0 0.0
      %655 = vmatprep.subr.mxu0 0.0
      %656 = vmatpush2.msra.mxu0 0.0
      %657 = vmatprep.subr.mxu0 0.0
      %658 = vmatpush2.msra.mxu0 0.0
      %659 = vmatprep.subr.mxu0 0.0
      %660 = vmatpush2.msra.mxu0 0.0
      %661 = vmatprep.mubr.f32.mxu0 0.0
      %662 = vmatmul.mubr.f32.gmra.mxu0 %v592
      %v663 = vpop.f32.mrf.mxu0
      %v664 = vadd.f32 %v588, %v663
      %v665 = vpop.f32.mrf.mxu0
      %666 = vdwg.mxu0
      %v667 = vmax.f32 %v664, 0.0
      %v668 = vld [vmem:[#allocation2] sm:$0xff]
      %v669 = vld [vmem:[%s5] sm:$0xf]
      %v670 = vld [vmem:[%s6] sm:$0xff]
      %v671 = vld [vmem:[%s6 + $0x8] sm:$0xff]
      %vm672 = vcmask 130048
      %v674 = vsel %vm672, %v667, 0
      %676 = vmatprep.subr.mxu0 0.0
      %677 = vmatpush1.msra.mxu0 0.0
      %678 = vmatprep.subr.mxu0 0.0
      %679 = vmatpush1.msra.mxu0 0.0
      %680 = vmatprep.subr.mxu0 0.0
      %681 = vmatpush1.msra.mxu0 0.0
      %682 = vmatprep.subr.mxu0 0.0
      %683 = vmatpush1.msra.mxu0 0.0
      %684 = vmatprep.subr.mxu0 0.0
      %685 = vmatpush1.msra.mxu0 0.0
      %686 = vmatprep.subr.mxu0 0.0
      %687 = vmatpush1.msra.mxu0 0.0
      %688 = vmatprep.subr.mxu0 0.0
      %689 = vmatpush1.msra.mxu0 0.0
      %690 = vmatprep.subr.mxu0 0.0
      %691 = vmatpush1.msra.mxu0 0.0
      %692 = vmatprep.subr.mxu0 0.0
      %693 = vmatpush1.msra.mxu0 0.0
      %694 = vmatprep.subr.mxu0 0.0
      %695 = vmatpush1.msra.mxu0 0.0
      %696 = vmatprep.subr.mxu0 0.0
      %697 = vmatpush1.msra.mxu0 0.0
      %698 = vmatprep.subr.mxu0 0.0
      %699 = vmatpush1.msra.mxu0 0.0
      %700 = vmatprep.subr.mxu0 0.0
      %701 = vmatpush1.msra.mxu0 0.0
      %702 = vmatprep.subr.mxu0 0.0
      %703 = vmatpush1.msra.mxu0 0.0
      %704 = vmatprep.subr.mxu0 0.0
      %705 = vmatpush1.msra.mxu0 %v671
      %706 = vmatprep.subr.mxu0 0.0
      %707 = vmatpush1.msra.mxu0 %v670
      %708 = vmatprep.subr.mxu0 0.0
      %709 = vmatpush2.msra.mxu0 0.0
      %710 = vmatprep.subr.mxu0 0.0
      %711 = vmatpush2.msra.mxu0 0.0
      %712 = vmatprep.subr.mxu0 0.0
      %713 = vmatpush2.msra.mxu0 0.0
      %714 = vmatprep.subr.mxu0 0.0
      %715 = vmatpush2.msra.mxu0 0.0
      %716 = vmatprep.subr.mxu0 0.0
      %717 = vmatpush2.msra.mxu0 0.0
      %718 = vmatprep.subr.mxu0 0.0
      %719 = vmatpush2.msra.mxu0 0.0
      %720 = vmatprep.subr.mxu0 0.0
      %721 = vmatpush2.msra.mxu0 0.0
      %722 = vmatprep.subr.mxu0 0.0
      %723 = vmatpush2.msra.mxu0 0.0
      %724 = vmatprep.subr.mxu0 0.0
      %725 = vmatpush2.msra.mxu0 0.0
      %726 = vmatprep.subr.mxu0 0.0
      %727 = vmatpush2.msra.mxu0 0.0
      %728 = vmatprep.subr.mxu0 0.0
      %729 = vmatpush2.msra.mxu0 0.0
      %730 = vmatprep.subr.mxu0 0.0
      %731 = vmatpush2.msra.mxu0 0.0
      %732 = vmatprep.subr.mxu0 0.0
      %733 = vmatpush2.msra.mxu0 0.0
      %734 = vmatprep.subr.mxu0 0.0
      %735 = vmatpush2.msra.mxu0 0.0
      %736 = vmatprep.subr.mxu0 0.0
      %737 = vmatpush2.msra.mxu0 0.0
      %738 = vmatprep.subr.mxu0 0.0
      %739 = vmatpush2.msra.mxu0 0.0
      %740 = vmatprep.mubr.f32.mxu0 0.0
      %741 = vmatmul.mubr.f32.gmra.mxu0 %v674
      %v742 = vpop.f32.mrf.mxu0
      %v743 = vadd.f32 0.0, %v742
      %v744 = vpop.f32.mrf.mxu0
      %745 = vdwg.mxu0
      %v747 = vsel %vm578, %v668, 0
      %v750 = vsel %vm570, %v669, 0
      %752 = vmatprep.subr.mxu0 0.0
      %753 = vmatpush1.msra.mxu0 0.0
      %754 = vmatprep.subr.mxu0 0.0
      %755 = vmatpush1.msra.mxu0 0.0
      %756 = vmatprep.subr.mxu0 0.0
      %757 = vmatpush1.msra.mxu0 0.0
      %758 = vmatprep.subr.mxu0 0.0
      %759 = vmatpush1.msra.mxu0 0.0
      %760 = vmatprep.subr.mxu0 0.0
      %761 = vmatpush1.msra.mxu0 0.0
      %762 = vmatprep.subr.mxu0 0.0
      %763 = vmatpush1.msra.mxu0 0.0
      %764 = vmatprep.subr.mxu0 0.0
      %765 = vmatpush1.msra.mxu0 0.0
      %766 = vmatprep.subr.mxu0 0.0
      %767 = vmatpush1.msra.mxu0 0.0
      %768 = vmatprep.subr.mxu0 0.0
      %769 = vmatpush1.msra.mxu0 0.0
      %770 = vmatprep.subr.mxu0 0.0
      %771 = vmatpush1.msra.mxu0 0.0
      %772 = vmatprep.subr.mxu0 0.0
      %773 = vmatpush1.msra.mxu0 0.0
      %774 = vmatprep.subr.mxu0 0.0
      %775 = vmatpush1.msra.mxu0 0.0
      %776 = vmatprep.subr.mxu0 0.0
      %777 = vmatpush1.msra.mxu0 0.0
      %778 = vmatprep.subr.mxu0 0.0
      %779 = vmatpush1.msra.mxu0 0.0
      %780 = vmatprep.subr.mxu0 0.0
      %781 = vmatpush1.msra.mxu0 0.0
      %782 = vmatprep.subr.mxu0 0.0
      %783 = vmatpush1.msra.mxu0 %v750
      %784 = vmatprep.subr.mxu0 0.0
      %785 = vmatpush2.msra.mxu0 0.0
      %786 = vmatprep.subr.mxu0 0.0
      %787 = vmatpush2.msra.mxu0 0.0
      %788 = vmatprep.subr.mxu0 0.0
      %789 = vmatpush2.msra.mxu0 0.0
      %790 = vmatprep.subr.mxu0 0.0
      %791 = vmatpush2.msra.mxu0 0.0
      %792 = vmatprep.subr.mxu0 0.0
      %793 = vmatpush2.msra.mxu0 0.0
      %794 = vmatprep.subr.mxu0 0.0
      %795 = vmatpush2.msra.mxu0 0.0
      %796 = vmatprep.subr.mxu0 0.0
      %797 = vmatpush2.msra.mxu0 0.0
      %798 = vmatprep.subr.mxu0 0.0
      %799 = vmatpush2.msra.mxu0 0.0
      %800 = vmatprep.subr.mxu0 0.0
      %801 = vmatpush2.msra.mxu0 0.0
      %802 = vmatprep.subr.mxu0 0.0
      %803 = vmatpush2.msra.mxu0 0.0
      %804 = vmatprep.subr.mxu0 0.0
      %805 = vmatpush2.msra.mxu0 0.0
      %806 = vmatprep.subr.mxu0 0.0
      %807 = vmatpush2.msra.mxu0 0.0
      %808 = vmatprep.subr.mxu0 0.0
      %809 = vmatpush2.msra.mxu0 0.0
      %810 = vmatprep.subr.mxu0 0.0
      %811 = vmatpush2.msra.mxu0 0.0
      %812 = vmatprep.subr.mxu0 0.0
      %813 = vmatpush2.msra.mxu0 0.0
      %814 = vmatprep.subr.mxu0 0.0
      %815 = vmatpush2.msra.mxu0 0.0
      %816 = vmatprep.mubr.f32.mxu0 0.0
      %817 = vmatmul.mubr.f32.gmra.mxu0 %v747
      %v818 = vpop.f32.mrf.mxu0
      %v819 = vadd.f32 %v743, %v818
      %v820 = vpop.f32.mrf.mxu0
      %821 = vdwg.mxu0
      %v822 = vld [vmem:[%s7] sm:$0x1]
      %v824 = vlaneseq
      %v825 = vshrl.u32 %v824, 7
      %v826 = vsub.s32 0, %v825
      %v827 = vrot.slane %v822, %v826
      %v829 = vadd.f32 %v819, %v827
      %v830 = vmax.f32 %v829, 0.0
      %v831 = vld [vmem:[%s8] sm:$0xff]
      %v832 = vld [vmem:[%s8 + $0x8] sm:$0xff]
      %v833 = vld [vmem:[%s8 + $0x10] sm:$0xff]
      %v834 = vld [vmem:[%s8 + $0x18] sm:$0xff]
      %v835 = vld [vmem:[%s9] sm:$0xff]
      %v836 = vld [vmem:[%s9 + $0x8] sm:$0xff]
      %v837 = vld [vmem:[%s9 + $0x10] sm:$0xff]
      %v838 = vld [vmem:[%s9 + $0x18] sm:$0xff]
      %840 = vset.pattern.permute.xlu0 0
      %841 = vperm.xlu0 %840, %v835
      %v842 = vpop.permute.xlu0 %841
      %845 = vset.pattern.permute.xlu0 0
      %846 = vperm.xlu0 %845, %v836
      %v847 = vpop.permute.xlu0 %846
      %850 = vset.pattern.permute.xlu0 0
      %851 = vperm.xlu0 %850, %v837
      %v852 = vpop.permute.xlu0 %851
      %855 = vset.pattern.permute.xlu0 0
      %856 = vperm.xlu0 %855, %v838
      %v857 = vpop.permute.xlu0 %856
      %vm859 = vcmask 261120
      %v861 = vsel %vm859, %v831, 0
      %v864 = vsel %vm859, %v832, 0
      %v867 = vsel %vm859, %v833, 0
      %v870 = vsel %vm859, %v834, 0
      %v873 = vsel %vm859, %v830, 0
      %875 = vmatprep.subr.mxu0 0.0
      %876 = vmatpush1.xpose.msra.mxu0 0.0
      %877 = vmatprep.subr.mxu0 0.0
      %878 = vmatpush1.xpose.msra.mxu0 0.0
      %879 = vmatprep.subr.mxu0 0.0
      %880 = vmatpush1.xpose.msra.mxu0 0.0
      %881 = vmatprep.subr.mxu0 0.0
      %882 = vmatpush1.xpose.msra.mxu0 0.0
      %883 = vmatprep.subr.mxu0 0.0
      %884 = vmatpush1.xpose.msra.mxu0 0.0
      %885 = vmatprep.subr.mxu0 0.0
      %886 = vmatpush1.xpose.msra.mxu0 0.0
      %887 = vmatprep.subr.mxu0 0.0
      %888 = vmatpush1.xpose.msra.mxu0 0.0
      %889 = vmatprep.subr.mxu0 0.0
      %890 = vmatpush1.xpose.msra.mxu0 0.0
      %891 = vmatprep.subr.mxu0 0.0
      %892 = vmatpush1.xpose.msra.mxu0 0.0
      %893 = vmatprep.subr.mxu0 0.0
      %894 = vmatpush1.xpose.msra.mxu0 0.0
      %895 = vmatprep.subr.mxu0 0.0
      %896 = vmatpush1.xpose.msra.mxu0 0.0
      %897 = vmatprep.subr.mxu0 0.0
      %898 = vmatpush1.xpose.msra.mxu0 0.0
      %899 = vmatprep.subr.mxu0 0.0
      %900 = vmatpush1.xpose.msra.mxu0 0.0
      %901 = vmatprep.subr.mxu0 0.0
      %902 = vmatpush1.xpose.msra.mxu0 0.0
      %903 = vmatprep.subr.mxu0 0.0
      %904 = vmatpush1.xpose.msra.mxu0 0.0
      %905 = vmatprep.subr.mxu0 0.0
      %906 = vmatpush1.xpose.msra.mxu0 %v873
      %907 = vmatprep.subr.mxu0 0.0
      %908 = vmatpush2.xpose.msra.mxu0 0.0
      %909 = vmatprep.subr.mxu0 0.0
      %910 = vmatpush2.xpose.msra.mxu0 0.0
      %911 = vmatprep.subr.mxu0 0.0
      %912 = vmatpush2.xpose.msra.mxu0 0.0
      %913 = vmatprep.subr.mxu0 0.0
      %914 = vmatpush2.xpose.msra.mxu0 0.0
      %915 = vmatprep.subr.mxu0 0.0
      %916 = vmatpush2.xpose.msra.mxu0 0.0
      %917 = vmatprep.subr.mxu0 0.0
      %918 = vmatpush2.xpose.msra.mxu0 0.0
      %919 = vmatprep.subr.mxu0 0.0
      %920 = vmatpush2.xpose.msra.mxu0 0.0
      %921 = vmatprep.subr.mxu0 0.0
      %922 = vmatpush2.xpose.msra.mxu0 0.0
      %923 = vmatprep.subr.mxu0 0.0
      %924 = vmatpush2.xpose.msra.mxu0 0.0
      %925 = vmatprep.subr.mxu0 0.0
      %926 = vmatpush2.xpose.msra.mxu0 0.0
      %927 = vmatprep.subr.mxu0 0.0
      %928 = vmatpush2.xpose.msra.mxu0 0.0
      %929 = vmatprep.subr.mxu0 0.0
      %930 = vmatpush2.xpose.msra.mxu0 0.0
      %931 = vmatprep.subr.mxu0 0.0
      %932 = vmatpush2.xpose.msra.mxu0 0.0
      %933 = vmatprep.subr.mxu0 0.0
      %934 = vmatpush2.xpose.msra.mxu0 0.0
      %935 = vmatprep.subr.mxu0 0.0
      %936 = vmatpush2.xpose.msra.mxu0 0.0
      %937 = vmatprep.subr.mxu0 0.0
      %938 = vmatpush2.xpose.msra.mxu0 0.0
      %939 = vmatprep.mubr.f32.mxu0 0.0
      %940 = vmatmul.mubr.f32.gmra.mxu0 %v861
      %v941 = vpop.f32.mrf.mxu0
      %v942 = vadd.f32 %v842, %v941
      %v943 = vpop.f32.mrf.mxu0
      %944 = vmatprep.mubr.f32.mxu0 0.0
      %945 = vmatmul.mubr.f32.gmra.mxu0 %v864
      %v946 = vpop.f32.mrf.mxu0
      %v947 = vadd.f32 %v847, %v946
      %v948 = vpop.f32.mrf.mxu0
      %949 = vmatprep.mubr.f32.mxu0 0.0
      %950 = vmatmul.mubr.f32.gmra.mxu0 %v867
      %v951 = vpop.f32.mrf.mxu0
      %v952 = vadd.f32 %v852, %v951
      %v953 = vpop.f32.mrf.mxu0
      %954 = vmatprep.mubr.f32.mxu0 0.0
      %955 = vmatmul.mubr.f32.gmra.mxu0 %v870
      %v956 = vpop.f32.mrf.mxu0
      %v957 = vadd.f32 %v857, %v956
      %v958 = vpop.f32.mrf.mxu0
      %959 = vdwg.mxu0
      %v960 = vmax.f32 %v942, 0.0
      %v961 = vmax.f32 %v947, 0.0
      %v962 = vmax.f32 %v952, 0.0
      %v963 = vmax.f32 %v957, 0.0
      %vm964 = vcmask 64512
      %965 = vst.msk [vmem:[%s387] sm:$0xff] %vm964, %v960
      %966 = vst.msk [vmem:[%s387 + $0x8] sm:$0xff] %vm964, %v961
      %967 = vst.msk [vmem:[%s387 + $0x10] sm:$0xff] %vm964, %v962
      %968 = vst.msk [vmem:[%s387 + $0x18] sm:$0xff] %vm964, %v963
      %p969 = scmp.lt.s32.totalorder %s31, 1
      %s970 = scalar_select %p969, %s31, 1
      %p971 = scmp.lt.s32.totalorder %s32, 0
      %s972 = scalar_select %p971, %s32, 0
      %s973 = smul.addr %s970, 4
      %s974 = sadd.s32 %s972, %s973
      %s975 = smul.addr %s974, 8
      %s976 = scalar_lea.vmem %s10, %s975
      // Predicated region
      $region57: #{lfe_forward.3} parent=55 // pred_check
        %p977 = pneg %p260
      $region58: #{lfe_forward.3} parent=55 // pred_check_branch
        %979 = sbr.rel (%p977) target = $region60
      $region59: #{lfe_forward.3} parent=55 // pred_region
        _
      $region60: #{lfe_forward.3} parent=55 // pred_fallthru
        _
    $region56: #{lfe_forward.3} parent=5 // pred_fallthru
      _
    %p980 = scmp.le.s32.totalorder 2, %s22
    // Predicated region
    $region61: #{lfe_forward.3} parent=5 // pred_check
      %p981 = pneg %p980
    $region62: #{lfe_forward.3} parent=5 // pred_check_branch
      %983 = sbr.rel (%p981) target = $region64
    $region63: #{lfe_forward.3} parent=5 // pred_region
      %s984 = ssub.s32 %s22, 2
      // Predicated region
      $region65: #{lfe_forward.3} parent=63 // pred_check
        %p985 = pneg %p266
      $region66: #{lfe_forward.3} parent=63 // pred_check_branch
        %987 = sbr.rel (%p985) target = $region68
      $region67: #{lfe_forward.3} parent=63 // pred_region
        %p988 = scmp.lt.s32.totalorder %s33, 1
        %s989 = scalar_select %p988, %s33, 1
        %p990 = scmp.lt.s32.totalorder %s34, 0
        %s991 = scalar_select %p990, %s34, 0
        %s992 = smul.addr %s989, 4
        %s993 = sadd.s32 %s991, %s992
        %s994 = smul.addr %s993, 8
        %s995 = scalar_lea.vmem %s10, %s994
      $region68: #{lfe_forward.3} parent=63 // pred_fallthru
        _
    $region64: #{lfe_forward.3} parent=5 // pred_fallthru
      _
  $region6: #{lfe_forward.3} parent=0 // loop_footer
    %s26 = sadd.s32 1, %s22
  $region7: #{lfe_forward.3} parent=0 // loop_footer_branch
    %21 = sbr.rel target = $region3
  $region8: #{lfe_forward.3} parent=0 // loop_exit
    _

</llo_original>
